<compile_context>
chip_gen: v7x
topology: tpu7x:2x2x1
jax: 0.10.0
libtpu: 0.0.40
codegen_flags: <defaults>
</compile_context>

<pallas_src>
import math

import jax
import jax.numpy as jnp
from jax.experimental import pallas as pl
from jax.experimental.pallas import tpu as pltpu


def _make_csar_kernel(H, W, C, PADM):
    HW = H * W

    def kernel(x_ref, ml_ref, mr_ref,
               w1_ref, b1_ref, w2_ref, b2_ref,
               wca1_ref, bca1_ref, wca2_ref, bca2_ref,
               wsa1_ref, bsa1_ref, wsa2_ref, bsa2_ref,
               wout_ref, bout_ref,
               o_ref,
               xpad_ref, patch_ref, cat_ref):
        # Zero only the lane margins of the flat padded scratch (cheap: 2*(C,PADM)
        # stores).  The interior is fully rewritten before every use, the margins
        # provide the vertical zero-padding of the 3x3 convs.
        xpad_ref[:, 0:PADM] = jnp.zeros((C, PADM), jnp.float32)
        xpad_ref[:, PADM + HW:PADM + HW + PADM] = jnp.zeros((C, PADM), jnp.float32)

        x = x_ref[...]                 # (C, HW)  lane-dense activations
        mask_l = ml_ref[...]           # (1, HW)  valid where x-coordinate >= 1
        mask_r = mr_ref[...]           # (1, HW)  valid where x-coordinate <= W-2

        def conv3x3(x_flat, w_mat, b_col):
            # x_flat: (C, HW), w_mat: (Cout, 9C), b_col: (Cout, 1)
            # Write the image into the flat padded scratch, then gather the 9
            # taps as static lane-offset reads (XLU rotates, no relayout), and
            # assemble one (9C, HW) im2col matrix -> a single MXU push.
            xpad_ref[:, PADM:PADM + HW] = x_flat
            for ky in range(3):
                for kx in range(3):
                    s = (ky - 1) * W + (kx - 1)
                    tap = xpad_ref[:, PADM + s:PADM + s + HW]   # (C, HW)
                    if kx == 0:          # dx = -1: left column invalid
                        tap = tap * mask_l
                    elif kx == 2:        # dx = +1: right column invalid
                        tap = tap * mask_r
                    t = ky * 3 + kx
                    patch_ref[t * C:(t + 1) * C, :] = tap
            return jnp.dot(w_mat, patch_ref[...],
                           preferred_element_type=jnp.float32) + b_col

        # conv_in: 3x3 -> ReLU -> 3x3
        h = jnp.maximum(conv3x3(x, w1_ref[...], b1_ref[...]), 0.0)   # (C, HW)
        x_in = conv3x3(h, w2_ref[...], b2_ref[...])                   # (C, HW)

        # Channel attention: global avg pool -> 1x1 -> ReLU -> 1x1 -> sigmoid
        pooled = jnp.mean(x_in, axis=1, keepdims=True)                # (C, 1)
        ca_h = jnp.maximum(
            jnp.dot(wca1_ref[...], pooled, preferred_element_type=jnp.float32)
            + bca1_ref[...], 0.0)                                     # (C//2, 1)
        ca = jax.nn.sigmoid(
            jnp.dot(wca2_ref[...], ca_h, preferred_element_type=jnp.float32)
            + bca2_ref[...])                                          # (C, 1)

        # Spatial attention: 1x1 -> ReLU -> 1x1 -> sigmoid (per pixel)
        sa_h = jnp.maximum(
            jnp.dot(wsa1_ref[...], x_in, preferred_element_type=jnp.float32)
            + bsa1_ref[...], 0.0)                                     # (2C, HW)
        sa = jax.nn.sigmoid(
            jnp.dot(wsa2_ref[...], sa_h, preferred_element_type=jnp.float32)
            + bsa2_ref[...])                                          # (C, HW)

        # conv_out over concat([x_in*ca, x_in*sa]) as ONE matmul (K = 2C)
        cat_ref[0:C, :] = x_in * ca
        cat_ref[C:2 * C, :] = x_in * sa
        x_out = jnp.dot(wout_ref[...], cat_ref[...],
                        preferred_element_type=jnp.float32) + bout_ref[...]

        o_ref[...] = x + x_out

    return kernel


def csar_forward(x, params):
    """x: (N, C, H, W) float32 (PyTorch NCHW layout). Returns (N, C, H, W)."""
    N, C, H, W = x.shape
    HW = H * W
    (w1, b1, w2, b2, wca1, bca1, wca2, bca2,
     wsa1, bsa1, wsa2, bsa2, wout, bout) = params

    # --- weight layout plumbing (done once, outside the kernel) ---------------
    def conv_w(w):   # (3,3,Cin,Cout) HWIO -> (Cout, 9*Cin), tap-major rows
        return jnp.transpose(w, (3, 0, 1, 2)).reshape(w.shape[3], 9 * w.shape[2])

    def mat(w):      # (Cin, Cout) -> (Cout, Cin)   (1x1 convs)
        return w.T

    def col(b):      # (1, Cout) -> (Cout, 1)
        return b.reshape(-1, 1)

    kparams = (conv_w(w1), col(b1), conv_w(w2), col(b2),
               mat(wca1), col(bca1), mat(wca2), col(bca2),
               mat(wsa1), col(bsa1), mat(wsa2), col(bsa2),
               mat(wout), col(bout))

    # horizontal-validity masks for the dx = -1 / +1 conv taps (f32 0/1)
    cols = jnp.arange(HW, dtype=jnp.int32) % W
    mask_l = (cols >= 1).astype(jnp.float32).reshape(1, HW)
    mask_r = (cols <= W - 2).astype(jnp.float32).reshape(1, HW)

    x_flat = x.reshape(N, C, HW)

    PADM = ((W + 1 + 127) // 128) * 128   # lane margin (>= W+1, 128-aligned)
    kernel = _make_csar_kernel(H, W, C, PADM)

    def full_spec(p):
        nd = p.ndim
        return pl.BlockSpec(p.shape, lambda n, _nd=nd: (0,) * _nd)

    grid_spec = pltpu.PrefetchScalarGridSpec(
        num_scalar_prefetch=0,
        grid=(N,),
        in_specs=[pl.BlockSpec((None, C, HW), lambda n: (n, 0, 0)),
                  full_spec(mask_l), full_spec(mask_r)]
                 + [full_spec(p) for p in kparams],
        out_specs=pl.BlockSpec((None, C, HW), lambda n: (n, 0, 0)),
        scratch_shapes=[
            pltpu.VMEM((C, HW + 2 * PADM), jnp.float32),   # flat padded image
            pltpu.VMEM((9 * C, HW), jnp.float32),          # im2col patch matrix
            pltpu.VMEM((2 * C, HW), jnp.float32),          # conv_out concat
        ],
    )
    out = pl.pallas_call(
        kernel,
        out_shape=jax.ShapeDtypeStruct((N, C, HW), jnp.float32),
        grid_spec=grid_spec,
        compiler_params=pltpu.CompilerParams(
            dimension_semantics=("parallel",),   # batch elems independent (v7x megacore)
            vmem_limit_bytes=32 * 1024 * 1024),
    )(x_flat, mask_l, mask_r, *kparams)
    return out.reshape(N, C, H, W)


def make_params(C, key):
    """Deterministic synthetic parameters (PyTorch-default-style uniform init)."""
    def uni(k, shape, fan_in):
        bound = 1.0 / math.sqrt(fan_in)
        return jax.random.uniform(k, shape, jnp.float32, -bound, bound)

    ks = jax.random.split(key, 14)
    params = (
        uni(ks[0], (3, 3, C, C), C * 9),        # conv_in[0] weight (HWIO)
        uni(ks[1], (1, C), C * 9),              # conv_in[0] bias
        uni(ks[2], (3, 3, C, C), C * 9),        # conv_in[2] weight (HWIO)
        uni(ks[3], (1, C), C * 9),              # conv_in[2] bias
        uni(ks[4], (C, C // 2), C),             # ca conv1 (1x1) weight
        uni(ks[5], (1, C // 2), C),             # ca conv1 bias
        uni(ks[6], (C // 2, C), C // 2),        # ca conv2 weight
        uni(ks[7], (1, C), C // 2),             # ca conv2 bias
        uni(ks[8], (C, 2 * C), C),              # sa conv1 weight
        uni(ks[9], (1, 2 * C), C),              # sa conv1 bias
        uni(ks[10], (2 * C, C), 2 * C),         # sa conv2 weight
        uni(ks[11], (1, C), 2 * C),             # sa conv2 bias
        uni(ks[12], (2 * C, C), 2 * C),         # conv_out weight
        uni(ks[13], (1, C), 2 * C),             # conv_out bias
    )
    return params


def ref_forward(x, params):
    """Pure-JAX reference (same math, NCHW) for correctness checking."""
    (w1, b1, w2, b2, wca1, bca1, wca2, bca2,
     wsa1, bsa1, wsa2, bsa2, wout, bout) = params
    N, C, H, W = x.shape

    def conv3(inp, w, b):
        xp = jnp.pad(inp, ((0, 0), (0, 0), (1, 1), (1, 1)))
        acc = jnp.zeros((N, w.shape[-1], H, W), jnp.float32)
        for ky in range(3):
            for kx in range(3):
                acc = acc + jnp.einsum('nchw,cd->ndhw',
                                       xp[:, :, ky:ky + H, kx:kx + W], w[ky, kx])
        return acc + b.reshape(1, -1, 1, 1)

    x_in = conv3(jnp.maximum(conv3(x, w1, b1), 0.0), w2, b2)
    pooled = jnp.mean(x_in, axis=(2, 3), keepdims=True)
    ca = jax.nn.sigmoid(
        jnp.einsum('ncij,cd->ndij',
                   jnp.maximum(jnp.einsum('ncij,cd->ndij', pooled, wca1)
                               + bca1.reshape(1, -1, 1, 1), 0.0),
                   wca2) + bca2.reshape(1, -1, 1, 1))
    sa = jax.nn.sigmoid(
        jnp.einsum('nchw,cd->ndhw',
                   jnp.maximum(jnp.einsum('nchw,cd->ndhw', x_in, wsa1)
                               + bsa1.reshape(1, -1, 1, 1), 0.0),
                   wsa2) + bsa2.reshape(1, -1, 1, 1))
    x_out = (jnp.einsum('nchw,cd->ndhw', x_in * ca, wout[:C])
             + jnp.einsum('nchw,cd->ndhw', x_in * sa, wout[C:])
             + bout.reshape(1, -1, 1, 1))
    return x + x_out


if __name__ == "__main__":
    N, C, H, W = 2, 4, 16, 16
    key = jax.random.PRNGKey(0)
    k_x, k_p = jax.random.split(key)
    x = jax.random.normal(k_x, (N, C, H, W), jnp.float32)   # NCHW like PyTorch
    params = make_params(C, k_p)

    out = csar_forward(x, params)
    out = jax.block_until_ready(out)

    ref = ref_forward(x, params)
    assert out.shape == (N, C, H, W)
    err = jnp.max(jnp.abs(out - ref))
    assert jnp.allclose(out, ref, atol=1e-4, rtol=1e-4), f"max abs err {err}"
    print("KERNEL_OK")
</pallas_src>

<mosaic_0001>
module attributes {stable_mosaic.version = 11 : i64} {
  func.func @kernel(%arg0: i32, %arg1: memref<1x4x256xf32, #tpu.memory_space<vmem>>, %arg2: memref<1x256xf32, #tpu.memory_space<vmem>>, %arg3: memref<1x256xf32, #tpu.memory_space<vmem>>, %arg4: memref<4x36xf32, #tpu.memory_space<vmem>>, %arg5: memref<4x1xf32, #tpu.memory_space<vmem>>, %arg6: memref<4x36xf32, #tpu.memory_space<vmem>>, %arg7: memref<4x1xf32, #tpu.memory_space<vmem>>, %arg8: memref<2x4xf32, #tpu.memory_space<vmem>>, %arg9: memref<2x1xf32, #tpu.memory_space<vmem>>, %arg10: memref<4x2xf32, #tpu.memory_space<vmem>>, %arg11: memref<4x1xf32, #tpu.memory_space<vmem>>, %arg12: memref<8x4xf32, #tpu.memory_space<vmem>>, %arg13: memref<8x1xf32, #tpu.memory_space<vmem>>, %arg14: memref<4x8xf32, #tpu.memory_space<vmem>>, %arg15: memref<4x1xf32, #tpu.memory_space<vmem>>, %arg16: memref<4x8xf32, #tpu.memory_space<vmem>>, %arg17: memref<4x1xf32, #tpu.memory_space<vmem>>, %arg18: memref<1x4x256xf32, #tpu.memory_space<vmem>>, %arg19: memref<4x512xf32, #tpu.memory_space<vmem>>, %arg20: memref<36x256xf32, #tpu.memory_space<vmem>>, %arg21: memref<8x256xf32, #tpu.memory_space<vmem>>) attributes {dimension_semantics = [#tpu.dimension_semantics<parallel>], iteration_bounds = array<i64: 2>, scalar_prefetch = 0 : i64, scratch_operands = 3 : i64, tpu.core_type = #tpu.core_type<tc>, window_params = [{transform_indices = @transform_0, window_bounds = array<i64: 1, 4, 256>}, {pipeline_mode = #tpu.pipeline_mode<synchronous>, transform_indices = @transform_1, window_bounds = array<i64: 1, 256>}, {pipeline_mode = #tpu.pipeline_mode<synchronous>, transform_indices = @transform_2, window_bounds = array<i64: 1, 256>}, {pipeline_mode = #tpu.pipeline_mode<synchronous>, transform_indices = @transform_3, window_bounds = array<i64: 4, 36>}, {pipeline_mode = #tpu.pipeline_mode<synchronous>, transform_indices = @transform_4, window_bounds = array<i64: 4, 1>}, {pipeline_mode = #tpu.pipeline_mode<synchronous>, transform_indices = @transform_5, window_bounds = array<i64: 4, 36>}, {pipeline_mode = #tpu.pipeline_mode<synchronous>, transform_indices = @transform_6, window_bounds = array<i64: 4, 1>}, {pipeline_mode = #tpu.pipeline_mode<synchronous>, transform_indices = @transform_7, window_bounds = array<i64: 2, 4>}, {pipeline_mode = #tpu.pipeline_mode<synchronous>, transform_indices = @transform_8, window_bounds = array<i64: 2, 1>}, {pipeline_mode = #tpu.pipeline_mode<synchronous>, transform_indices = @transform_9, window_bounds = array<i64: 4, 2>}, {pipeline_mode = #tpu.pipeline_mode<synchronous>, transform_indices = @transform_10, window_bounds = array<i64: 4, 1>}, {pipeline_mode = #tpu.pipeline_mode<synchronous>, transform_indices = @transform_11, window_bounds = array<i64: 8, 4>}, {pipeline_mode = #tpu.pipeline_mode<synchronous>, transform_indices = @transform_12, window_bounds = array<i64: 8, 1>}, {pipeline_mode = #tpu.pipeline_mode<synchronous>, transform_indices = @transform_13, window_bounds = array<i64: 4, 8>}, {pipeline_mode = #tpu.pipeline_mode<synchronous>, transform_indices = @transform_14, window_bounds = array<i64: 4, 1>}, {pipeline_mode = #tpu.pipeline_mode<synchronous>, transform_indices = @transform_15, window_bounds = array<i64: 4, 8>}, {pipeline_mode = #tpu.pipeline_mode<synchronous>, transform_indices = @transform_16, window_bounds = array<i64: 4, 1>}, {transform_indices = @transform_17, window_bounds = array<i64: 1, 4, 256>}]} {
    %cst = arith.constant 0.000000e+00 : f32
    %0 = vector.broadcast %cst : f32 to vector<4x128xf32>
    %c0 = arith.constant 0 : index
    %c0_0 = arith.constant 0 : index
    %1 = vector.load %arg19[%c0, %c0_0] : memref<4x512xf32, #tpu.memory_space<vmem>>, vector<4x128xf32>
    tpu.vector_store %arg19[%c0, %c0_0], %0 {strides = array<i32>} : memref<4x512xf32, #tpu.memory_space<vmem>>, vector<4x128xf32>,
    %cst_1 = arith.constant 0.000000e+00 : f32
    %2 = vector.broadcast %cst_1 : f32 to vector<4x128xf32>
    %c0_2 = arith.constant 0 : index
    %c384 = arith.constant 384 : index
    %3 = vector.load %arg19[%c0_2, %c384] : memref<4x512xf32, #tpu.memory_space<vmem>>, vector<4x128xf32>
    tpu.vector_store %arg19[%c0_2, %c384], %2 {strides = array<i32>} : memref<4x512xf32, #tpu.memory_space<vmem>>, vector<4x128xf32>,
    %c0_3 = arith.constant 0 : index
    %c0_4 = arith.constant 0 : index
    %c0_5 = arith.constant 0 : index
    %4 = vector.load %arg1[%c0_3, %c0_4, %c0_5] : memref<1x4x256xf32, #tpu.memory_space<vmem>>, vector<1x4x256xf32>
    %5 = vector.shape_cast %4 : vector<1x4x256xf32> to vector<4x256xf32>
    %c0_6 = arith.constant 0 : index
    %c0_7 = arith.constant 0 : index
    %6 = vector.load %arg2[%c0_6, %c0_7] : memref<1x256xf32, #tpu.memory_space<vmem>>, vector<1x256xf32>
    %c0_8 = arith.constant 0 : index
    %c0_9 = arith.constant 0 : index
    %7 = vector.load %arg3[%c0_8, %c0_9] : memref<1x256xf32, #tpu.memory_space<vmem>>, vector<1x256xf32>
    %c0_10 = arith.constant 0 : index
    %c0_11 = arith.constant 0 : index
    %8 = vector.load %arg4[%c0_10, %c0_11] : memref<4x36xf32, #tpu.memory_space<vmem>>, vector<4x36xf32>
    %c0_12 = arith.constant 0 : index
    %c0_13 = arith.constant 0 : index
    %9 = vector.load %arg5[%c0_12, %c0_13] : memref<4x1xf32, #tpu.memory_space<vmem>>, vector<4x1xf32>
    %c0_14 = arith.constant 0 : index
    %c128 = arith.constant 128 : index
    %10 = vector.load %arg19[%c0_14, %c128] : memref<4x512xf32, #tpu.memory_space<vmem>>, vector<4x256xf32>
    tpu.vector_store %arg19[%c0_14, %c128], %5 {strides = array<i32>} : memref<4x512xf32, #tpu.memory_space<vmem>>, vector<4x256xf32>,
    %c0_15 = arith.constant 0 : index
    %c111 = arith.constant 111 : index
    %11 = vector.load %arg19[%c0_15, %c111] : memref<4x512xf32, #tpu.memory_space<vmem>>, vector<4x256xf32>
    %12 = vector.broadcast %6 : vector<1x256xf32> to vector<4x256xf32>
    %13 = arith.mulf %11, %12 : vector<4x256xf32>
    %c0_16 = arith.constant 0 : index
    %c0_17 = arith.constant 0 : index
    %14 = vector.load %arg20[%c0_16, %c0_17] : memref<36x256xf32, #tpu.memory_space<vmem>>, vector<4x256xf32>
    tpu.vector_store %arg20[%c0_16, %c0_17], %13 {strides = array<i32>} : memref<36x256xf32, #tpu.memory_space<vmem>>, vector<4x256xf32>,
    %c0_18 = arith.constant 0 : index
    %c112 = arith.constant 112 : index
    %15 = vector.load %arg19[%c0_18, %c112] : memref<4x512xf32, #tpu.memory_space<vmem>>, vector<4x256xf32>
    %c4 = arith.constant 4 : index
    %c0_19 = arith.constant 0 : index
    %16 = vector.load %arg20[%c4, %c0_19] : memref<36x256xf32, #tpu.memory_space<vmem>>, vector<4x256xf32>
    tpu.vector_store %arg20[%c4, %c0_19], %15 {strides = array<i32>} : memref<36x256xf32, #tpu.memory_space<vmem>>, vector<4x256xf32>,
    %c0_20 = arith.constant 0 : index
    %c113 = arith.constant 113 : index
    %17 = vector.load %arg19[%c0_20, %c113] : memref<4x512xf32, #tpu.memory_space<vmem>>, vector<4x256xf32>
    %18 = vector.broadcast %7 : vector<1x256xf32> to vector<4x256xf32>
    %19 = arith.mulf %17, %18 : vector<4x256xf32>
    %c8 = arith.constant 8 : index
    %c0_21 = arith.constant 0 : index
    %20 = vector.load %arg20[%c8, %c0_21] : memref<36x256xf32, #tpu.memory_space<vmem>>, vector<4x256xf32>
    tpu.vector_store %arg20[%c8, %c0_21], %19 {strides = array<i32>} : memref<36x256xf32, #tpu.memory_space<vmem>>, vector<4x256xf32>,
    %c0_22 = arith.constant 0 : index
    %c127 = arith.constant 127 : index
    %21 = vector.load %arg19[%c0_22, %c127] : memref<4x512xf32, #tpu.memory_space<vmem>>, vector<4x256xf32>
    %22 = vector.broadcast %6 : vector<1x256xf32> to vector<4x256xf32>
    %23 = arith.mulf %21, %22 : vector<4x256xf32>
    %c12 = arith.constant 12 : index
    %c0_23 = arith.constant 0 : index
    %24 = vector.load %arg20[%c12, %c0_23] : memref<36x256xf32, #tpu.memory_space<vmem>>, vector<4x256xf32>
    tpu.vector_store %arg20[%c12, %c0_23], %23 {strides = array<i32>} : memref<36x256xf32, #tpu.memory_space<vmem>>, vector<4x256xf32>,
    %c0_24 = arith.constant 0 : index
    %c128_25 = arith.constant 128 : index
    %25 = vector.load %arg19[%c0_24, %c128_25] : memref<4x512xf32, #tpu.memory_space<vmem>>, vector<4x256xf32>
    %c16 = arith.constant 16 : index
    %c0_26 = arith.constant 0 : index
    %26 = vector.load %arg20[%c16, %c0_26] : memref<36x256xf32, #tpu.memory_space<vmem>>, vector<4x256xf32>
    tpu.vector_store %arg20[%c16, %c0_26], %25 {strides = array<i32>} : memref<36x256xf32, #tpu.memory_space<vmem>>, vector<4x256xf32>,
    %c0_27 = arith.constant 0 : index
    %c129 = arith.constant 129 : index
    %27 = vector.load %arg19[%c0_27, %c129] : memref<4x512xf32, #tpu.memory_space<vmem>>, vector<4x256xf32>
    %28 = vector.broadcast %7 : vector<1x256xf32> to vector<4x256xf32>
    %29 = arith.mulf %27, %28 : vector<4x256xf32>
    %c20 = arith.constant 20 : index
    %c0_28 = arith.constant 0 : index
    %30 = vector.load %arg20[%c20, %c0_28] : memref<36x256xf32, #tpu.memory_space<vmem>>, vector<4x256xf32>
    tpu.vector_store %arg20[%c20, %c0_28], %29 {strides = array<i32>} : memref<36x256xf32, #tpu.memory_space<vmem>>, vector<4x256xf32>,
    %c0_29 = arith.constant 0 : index
    %c143 = arith.constant 143 : index
    %31 = vector.load %arg19[%c0_29, %c143] : memref<4x512xf32, #tpu.memory_space<vmem>>, vector<4x256xf32>
    %32 = vector.broadcast %6 : vector<1x256xf32> to vector<4x256xf32>
    %33 = arith.mulf %31, %32 : vector<4x256xf32>
    %c24 = arith.constant 24 : index
    %c0_30 = arith.constant 0 : index
    %34 = vector.load %arg20[%c24, %c0_30] : memref<36x256xf32, #tpu.memory_space<vmem>>, vector<4x256xf32>
    tpu.vector_store %arg20[%c24, %c0_30], %33 {strides = array<i32>} : memref<36x256xf32, #tpu.memory_space<vmem>>, vector<4x256xf32>,
    %c0_31 = arith.constant 0 : index
    %c144 = arith.constant 144 : index
    %35 = vector.load %arg19[%c0_31, %c144] : memref<4x512xf32, #tpu.memory_space<vmem>>, vector<4x256xf32>
    %c28 = arith.constant 28 : index
    %c0_32 = arith.constant 0 : index
    %36 = vector.load %arg20[%c28, %c0_32] : memref<36x256xf32, #tpu.memory_space<vmem>>, vector<4x256xf32>
    tpu.vector_store %arg20[%c28, %c0_32], %35 {strides = array<i32>} : memref<36x256xf32, #tpu.memory_space<vmem>>, vector<4x256xf32>,
    %c0_33 = arith.constant 0 : index
    %c145 = arith.constant 145 : index
    %37 = vector.load %arg19[%c0_33, %c145] : memref<4x512xf32, #tpu.memory_space<vmem>>, vector<4x256xf32>
    %38 = vector.broadcast %7 : vector<1x256xf32> to vector<4x256xf32>
    %39 = arith.mulf %37, %38 : vector<4x256xf32>
    %c32 = arith.constant 32 : index
    %c0_34 = arith.constant 0 : index
    %40 = vector.load %arg20[%c32, %c0_34] : memref<36x256xf32, #tpu.memory_space<vmem>>, vector<4x256xf32>
    tpu.vector_store %arg20[%c32, %c0_34], %39 {strides = array<i32>} : memref<36x256xf32, #tpu.memory_space<vmem>>, vector<4x256xf32>,
    %c0_35 = arith.constant 0 : index
    %c0_36 = arith.constant 0 : index
    %41 = vector.load %arg20[%c0_35, %c0_36] : memref<36x256xf32, #tpu.memory_space<vmem>>, vector<36x256xf32>
    %cst_37 = arith.constant dense<0.000000e+00> : vector<4x256xf32>
    %42 = tpu.matmul %8, %41, %cst_37 {dimension_numbers = #tpu.dot_dimension_numbers<[1], [0], [0], [1], [0, 0, 1, 1], [], []>} : vector<4x36xf32>, vector<36x256xf32>, vector<4x256xf32> -> vector<4x256xf32>
    %43 = vector.broadcast %9 : vector<4x1xf32> to vector<4x256xf32>
    %44 = arith.addf %42, %43 : vector<4x256xf32>
    %cst_38 = arith.constant 0.000000e+00 : f32
    %45 = vector.broadcast %cst_38 : f32 to vector<4x256xf32>
    %46 = arith.maximumf %44, %45 : vector<4x256xf32>
    %c0_39 = arith.constant 0 : index
    %c0_40 = arith.constant 0 : index
    %47 = vector.load %arg6[%c0_39, %c0_40] : memref<4x36xf32, #tpu.memory_space<vmem>>, vector<4x36xf32>
    %c0_41 = arith.constant 0 : index
    %c0_42 = arith.constant 0 : index
    %48 = vector.load %arg7[%c0_41, %c0_42] : memref<4x1xf32, #tpu.memory_space<vmem>>, vector<4x1xf32>
    %c0_43 = arith.constant 0 : index
    %c128_44 = arith.constant 128 : index
    %49 = vector.load %arg19[%c0_43, %c128_44] : memref<4x512xf32, #tpu.memory_space<vmem>>, vector<4x256xf32>
    tpu.vector_store %arg19[%c0_43, %c128_44], %46 {strides = array<i32>} : memref<4x512xf32, #tpu.memory_space<vmem>>, vector<4x256xf32>,
    %c0_45 = arith.constant 0 : index
    %c111_46 = arith.constant 111 : index
    %50 = vector.load %arg19[%c0_45, %c111_46] : memref<4x512xf32, #tpu.memory_space<vmem>>, vector<4x256xf32>
    %51 = vector.broadcast %6 : vector<1x256xf32> to vector<4x256xf32>
    %52 = arith.mulf %50, %51 : vector<4x256xf32>
    %c0_47 = arith.constant 0 : index
    %c0_48 = arith.constant 0 : index
    %53 = vector.load %arg20[%c0_47, %c0_48] : memref<36x256xf32, #tpu.memory_space<vmem>>, vector<4x256xf32>
    tpu.vector_store %arg20[%c0_47, %c0_48], %52 {strides = array<i32>} : memref<36x256xf32, #tpu.memory_space<vmem>>, vector<4x256xf32>,
    %c0_49 = arith.constant 0 : index
    %c112_50 = arith.constant 112 : index
    %54 = vector.load %arg19[%c0_49, %c112_50] : memref<4x512xf32, #tpu.memory_space<vmem>>, vector<4x256xf32>
    %c4_51 = arith.constant 4 : index
    %c0_52 = arith.constant 0 : index
    %55 = vector.load %arg20[%c4_51, %c0_52] : memref<36x256xf32, #tpu.memory_space<vmem>>, vector<4x256xf32>
    tpu.vector_store %arg20[%c4_51, %c0_52], %54 {strides = array<i32>} : memref<36x256xf32, #tpu.memory_space<vmem>>, vector<4x256xf32>,
    %c0_53 = arith.constant 0 : index
    %c113_54 = arith.constant 113 : index
    %56 = vector.load %arg19[%c0_53, %c113_54] : memref<4x512xf32, #tpu.memory_space<vmem>>, vector<4x256xf32>
    %57 = vector.broadcast %7 : vector<1x256xf32> to vector<4x256xf32>
    %58 = arith.mulf %56, %57 : vector<4x256xf32>
    %c8_55 = arith.constant 8 : index
    %c0_56 = arith.constant 0 : index
    %59 = vector.load %arg20[%c8_55, %c0_56] : memref<36x256xf32, #tpu.memory_space<vmem>>, vector<4x256xf32>
    tpu.vector_store %arg20[%c8_55, %c0_56], %58 {strides = array<i32>} : memref<36x256xf32, #tpu.memory_space<vmem>>, vector<4x256xf32>,
    %c0_57 = arith.constant 0 : index
    %c127_58 = arith.constant 127 : index
    %60 = vector.load %arg19[%c0_57, %c127_58] : memref<4x512xf32, #tpu.memory_space<vmem>>, vector<4x256xf32>
    %61 = vector.broadcast %6 : vector<1x256xf32> to vector<4x256xf32>
    %62 = arith.mulf %60, %61 : vector<4x256xf32>
    %c12_59 = arith.constant 12 : index
    %c0_60 = arith.constant 0 : index
    %63 = vector.load %arg20[%c12_59, %c0_60] : memref<36x256xf32, #tpu.memory_space<vmem>>, vector<4x256xf32>
    tpu.vector_store %arg20[%c12_59, %c0_60], %62 {strides = array<i32>} : memref<36x256xf32, #tpu.memory_space<vmem>>, vector<4x256xf32>,
    %c0_61 = arith.constant 0 : index
    %c128_62 = arith.constant 128 : index
    %64 = vector.load %arg19[%c0_61, %c128_62] : memref<4x512xf32, #tpu.memory_space<vmem>>, vector<4x256xf32>
    %c16_63 = arith.constant 16 : index
    %c0_64 = arith.constant 0 : index
    %65 = vector.load %arg20[%c16_63, %c0_64] : memref<36x256xf32, #tpu.memory_space<vmem>>, vector<4x256xf32>
    tpu.vector_store %arg20[%c16_63, %c0_64], %64 {strides = array<i32>} : memref<36x256xf32, #tpu.memory_space<vmem>>, vector<4x256xf32>,
    %c0_65 = arith.constant 0 : index
    %c129_66 = arith.constant 129 : index
    %66 = vector.load %arg19[%c0_65, %c129_66] : memref<4x512xf32, #tpu.memory_space<vmem>>, vector<4x256xf32>
    %67 = vector.broadcast %7 : vector<1x256xf32> to vector<4x256xf32>
    %68 = arith.mulf %66, %67 : vector<4x256xf32>
    %c20_67 = arith.constant 20 : index
    %c0_68 = arith.constant 0 : index
    %69 = vector.load %arg20[%c20_67, %c0_68] : memref<36x256xf32, #tpu.memory_space<vmem>>, vector<4x256xf32>
    tpu.vector_store %arg20[%c20_67, %c0_68], %68 {strides = array<i32>} : memref<36x256xf32, #tpu.memory_space<vmem>>, vector<4x256xf32>,
    %c0_69 = arith.constant 0 : index
    %c143_70 = arith.constant 143 : index
    %70 = vector.load %arg19[%c0_69, %c143_70] : memref<4x512xf32, #tpu.memory_space<vmem>>, vector<4x256xf32>
    %71 = vector.broadcast %6 : vector<1x256xf32> to vector<4x256xf32>
    %72 = arith.mulf %70, %71 : vector<4x256xf32>
    %c24_71 = arith.constant 24 : index
    %c0_72 = arith.constant 0 : index
    %73 = vector.load %arg20[%c24_71, %c0_72] : memref<36x256xf32, #tpu.memory_space<vmem>>, vector<4x256xf32>
    tpu.vector_store %arg20[%c24_71, %c0_72], %72 {strides = array<i32>} : memref<36x256xf32, #tpu.memory_space<vmem>>, vector<4x256xf32>,
    %c0_73 = arith.constant 0 : index
    %c144_74 = arith.constant 144 : index
    %74 = vector.load %arg19[%c0_73, %c144_74] : memref<4x512xf32, #tpu.memory_space<vmem>>, vector<4x256xf32>
    %c28_75 = arith.constant 28 : index
    %c0_76 = arith.constant 0 : index
    %75 = vector.load %arg20[%c28_75, %c0_76] : memref<36x256xf32, #tpu.memory_space<vmem>>, vector<4x256xf32>
    tpu.vector_store %arg20[%c28_75, %c0_76], %74 {strides = array<i32>} : memref<36x256xf32, #tpu.memory_space<vmem>>, vector<4x256xf32>,
    %c0_77 = arith.constant 0 : index
    %c145_78 = arith.constant 145 : index
    %76 = vector.load %arg19[%c0_77, %c145_78] : memref<4x512xf32, #tpu.memory_space<vmem>>, vector<4x256xf32>
    %77 = vector.broadcast %7 : vector<1x256xf32> to vector<4x256xf32>
    %78 = arith.mulf %76, %77 : vector<4x256xf32>
    %c32_79 = arith.constant 32 : index
    %c0_80 = arith.constant 0 : index
    %79 = vector.load %arg20[%c32_79, %c0_80] : memref<36x256xf32, #tpu.memory_space<vmem>>, vector<4x256xf32>
    tpu.vector_store %arg20[%c32_79, %c0_80], %78 {strides = array<i32>} : memref<36x256xf32, #tpu.memory_space<vmem>>, vector<4x256xf32>,
    %c0_81 = arith.constant 0 : index
    %c0_82 = arith.constant 0 : index
    %80 = vector.load %arg20[%c0_81, %c0_82] : memref<36x256xf32, #tpu.memory_space<vmem>>, vector<36x256xf32>
    %cst_83 = arith.constant dense<0.000000e+00> : vector<4x256xf32>
    %81 = tpu.matmul %47, %80, %cst_83 {dimension_numbers = #tpu.dot_dimension_numbers<[1], [0], [0], [1], [0, 0, 1, 1], [], []>} : vector<4x36xf32>, vector<36x256xf32>, vector<4x256xf32> -> vector<4x256xf32>
    %82 = vector.broadcast %48 : vector<4x1xf32> to vector<4x256xf32>
    %83 = arith.addf %81, %82 : vector<4x256xf32>
    %cst_84 = arith.constant dense<0.000000e+00> : vector<4xf32>
    %84 = vector.multi_reduction <add>, %83, %cst_84 [1] : vector<4x256xf32> to vector<4xf32>
    %85 = vector.shape_cast %84 : vector<4xf32> to vector<4x1xf32>
    %cst_85 = arith.constant 2.560000e+02 : f32
    %86 = vector.broadcast %cst_85 : f32 to vector<4x1xf32>
    %87 = arith.divf %85, %86 : vector<4x1xf32>
    %c0_86 = arith.constant 0 : index
    %c0_87 = arith.constant 0 : index
    %88 = vector.load %arg8[%c0_86, %c0_87] : memref<2x4xf32, #tpu.memory_space<vmem>>, vector<2x4xf32>
    %cst_88 = arith.constant dense<0.000000e+00> : vector<2x1xf32>
    %89 = tpu.matmul %88, %87, %cst_88 {dimension_numbers = #tpu.dot_dimension_numbers<[1], [0], [0], [1], [0, 0, 1, 1], [], []>} : vector<2x4xf32>, vector<4x1xf32>, vector<2x1xf32> -> vector<2x1xf32>
    %c0_89 = arith.constant 0 : index
    %c0_90 = arith.constant 0 : index
    %90 = vector.load %arg9[%c0_89, %c0_90] : memref<2x1xf32, #tpu.memory_space<vmem>>, vector<2x1xf32>
    %91 = arith.addf %89, %90 : vector<2x1xf32>
    %cst_91 = arith.constant 0.000000e+00 : f32
    %92 = vector.broadcast %cst_91 : f32 to vector<2x1xf32>
    %93 = arith.maximumf %91, %92 : vector<2x1xf32>
    %c0_92 = arith.constant 0 : index
    %c0_93 = arith.constant 0 : index
    %94 = vector.load %arg10[%c0_92, %c0_93] : memref<4x2xf32, #tpu.memory_space<vmem>>, vector<4x2xf32>
    %cst_94 = arith.constant dense<0.000000e+00> : vector<4x1xf32>
    %95 = tpu.matmul %94, %93, %cst_94 {dimension_numbers = #tpu.dot_dimension_numbers<[1], [0], [0], [1], [0, 0, 1, 1], [], []>} : vector<4x2xf32>, vector<2x1xf32>, vector<4x1xf32> -> vector<4x1xf32>
    %c0_95 = arith.constant 0 : index
    %c0_96 = arith.constant 0 : index
    %96 = vector.load %arg11[%c0_95, %c0_96] : memref<4x1xf32, #tpu.memory_space<vmem>>, vector<4x1xf32>
    %97 = arith.addf %95, %96 : vector<4x1xf32>
    %98 = arith.negf %97 : vector<4x1xf32>
    %99 = math.exp %98 : vector<4x1xf32>
    %cst_97 = arith.constant 1.000000e+00 : f32
    %100 = vector.broadcast %cst_97 : f32 to vector<4x1xf32>
    %101 = arith.addf %100, %99 : vector<4x1xf32>
    %102 = arith.divf %100, %101 : vector<4x1xf32>
    %c0_98 = arith.constant 0 : index
    %c0_99 = arith.constant 0 : index
    %103 = vector.load %arg12[%c0_98, %c0_99] : memref<8x4xf32, #tpu.memory_space<vmem>>, vector<8x4xf32>
    %cst_100 = arith.constant dense<0.000000e+00> : vector<8x256xf32>
    %104 = tpu.matmul %103, %83, %cst_100 {dimension_numbers = #tpu.dot_dimension_numbers<[1], [0], [0], [1], [0, 0, 1, 1], [], []>} : vector<8x4xf32>, vector<4x256xf32>, vector<8x256xf32> -> vector<8x256xf32>
    %c0_101 = arith.constant 0 : index
    %c0_102 = arith.constant 0 : index
    %105 = vector.load %arg13[%c0_101, %c0_102] : memref<8x1xf32, #tpu.memory_space<vmem>>, vector<8x1xf32>
    %106 = vector.broadcast %105 : vector<8x1xf32> to vector<8x256xf32>
    %107 = arith.addf %104, %106 : vector<8x256xf32>
    %cst_103 = arith.constant 0.000000e+00 : f32
    %108 = vector.broadcast %cst_103 : f32 to vector<8x256xf32>
    %109 = arith.maximumf %107, %108 : vector<8x256xf32>
    %c0_104 = arith.constant 0 : index
    %c0_105 = arith.constant 0 : index
    %110 = vector.load %arg14[%c0_104, %c0_105] : memref<4x8xf32, #tpu.memory_space<vmem>>, vector<4x8xf32>
    %cst_106 = arith.constant dense<0.000000e+00> : vector<4x256xf32>
    %111 = tpu.matmul %110, %109, %cst_106 {dimension_numbers = #tpu.dot_dimension_numbers<[1], [0], [0], [1], [0, 0, 1, 1], [], []>} : vector<4x8xf32>, vector<8x256xf32>, vector<4x256xf32> -> vector<4x256xf32>
    %c0_107 = arith.constant 0 : index
    %c0_108 = arith.constant 0 : index
    %112 = vector.load %arg15[%c0_107, %c0_108] : memref<4x1xf32, #tpu.memory_space<vmem>>, vector<4x1xf32>
    %113 = vector.broadcast %112 : vector<4x1xf32> to vector<4x256xf32>
    %114 = arith.addf %111, %113 : vector<4x256xf32>
    %115 = arith.negf %114 : vector<4x256xf32>
    %116 = math.exp %115 : vector<4x256xf32>
    %cst_109 = arith.constant 1.000000e+00 : f32
    %117 = vector.broadcast %cst_109 : f32 to vector<4x256xf32>
    %118 = arith.addf %117, %116 : vector<4x256xf32>
    %119 = arith.divf %117, %118 : vector<4x256xf32>
    %120 = vector.broadcast %102 : vector<4x1xf32> to vector<4x256xf32>
    %121 = arith.mulf %83, %120 : vector<4x256xf32>
    %c0_110 = arith.constant 0 : index
    %c0_111 = arith.constant 0 : index
    %122 = vector.load %arg21[%c0_110, %c0_111] : memref<8x256xf32, #tpu.memory_space<vmem>>, vector<4x256xf32>
    tpu.vector_store %arg21[%c0_110, %c0_111], %121 {strides = array<i32>} : memref<8x256xf32, #tpu.memory_space<vmem>>, vector<4x256xf32>,
    %123 = arith.mulf %83, %119 : vector<4x256xf32>
    %c4_112 = arith.constant 4 : index
    %c0_113 = arith.constant 0 : index
    %124 = vector.load %arg21[%c4_112, %c0_113] : memref<8x256xf32, #tpu.memory_space<vmem>>, vector<4x256xf32>
    tpu.vector_store %arg21[%c4_112, %c0_113], %123 {strides = array<i32>} : memref<8x256xf32, #tpu.memory_space<vmem>>, vector<4x256xf32>,
    %c0_114 = arith.constant 0 : index
    %c0_115 = arith.constant 0 : index
    %125 = vector.load %arg16[%c0_114, %c0_115] : memref<4x8xf32, #tpu.memory_space<vmem>>, vector<4x8xf32>
    %c0_116 = arith.constant 0 : index
    %c0_117 = arith.constant 0 : index
    %126 = vector.load %arg21[%c0_116, %c0_117] : memref<8x256xf32, #tpu.memory_space<vmem>>, vector<8x256xf32>
    %cst_118 = arith.constant dense<0.000000e+00> : vector<4x256xf32>
    %127 = tpu.matmul %125, %126, %cst_118 {dimension_numbers = #tpu.dot_dimension_numbers<[1], [0], [0], [1], [0, 0, 1, 1], [], []>} : vector<4x8xf32>, vector<8x256xf32>, vector<4x256xf32> -> vector<4x256xf32>
    %c0_119 = arith.constant 0 : index
    %c0_120 = arith.constant 0 : index
    %128 = vector.load %arg17[%c0_119, %c0_120] : memref<4x1xf32, #tpu.memory_space<vmem>>, vector<4x1xf32>
    %129 = vector.broadcast %128 : vector<4x1xf32> to vector<4x256xf32>
    %130 = arith.addf %127, %129 : vector<4x256xf32>
    %131 = arith.addf %5, %130 : vector<4x256xf32>
    %c0_121 = arith.constant 0 : index
    %c0_122 = arith.constant 0 : index
    %c0_123 = arith.constant 0 : index
    %132 = vector.load %arg18[%c0_121, %c0_122, %c0_123] : memref<1x4x256xf32, #tpu.memory_space<vmem>>, vector<1x4x256xf32>
    %133 = vector.shape_cast %132 : vector<1x4x256xf32> to vector<4x256xf32>
    %134 = vector.shape_cast %131 : vector<4x256xf32> to vector<1x4x256xf32>
    tpu.vector_store %arg18[%c0_121, %c0_122, %c0_123], %134 {strides = array<i32>} : memref<1x4x256xf32, #tpu.memory_space<vmem>>, vector<1x4x256xf32>,
    return
  }
  func.func @transform_0(%arg0: i32) -> (i32, i32, i32) {
    %c0_i32 = arith.constant 0 : i32
    %c0_i32_0 = arith.constant 0 : i32
    %c0_i32_1 = arith.constant 0 : i32
    return %arg0, %c0_i32, %c0_i32_0 : i32, i32, i32
  }
  func.func @transform_1(%arg0: i32) -> (i32, i32) {
    %c0_i32 = arith.constant 0 : i32
    %c0_i32_0 = arith.constant 0 : i32
    %c0_i32_1 = arith.constant 0 : i32
    return %c0_i32, %c0_i32_0 : i32, i32
  }
  func.func @transform_2(%arg0: i32) -> (i32, i32) {
    %c0_i32 = arith.constant 0 : i32
    %c0_i32_0 = arith.constant 0 : i32
    %c0_i32_1 = arith.constant 0 : i32
    return %c0_i32, %c0_i32_0 : i32, i32
  }
  func.func @transform_3(%arg0: i32) -> (i32, i32) {
    %c0_i32 = arith.constant 0 : i32
    %c0_i32_0 = arith.constant 0 : i32
    %c0_i32_1 = arith.constant 0 : i32
    return %c0_i32, %c0_i32_0 : i32, i32
  }
  func.func @transform_4(%arg0: i32) -> (i32, i32) {
    %c0_i32 = arith.constant 0 : i32
    %c0_i32_0 = arith.constant 0 : i32
    %c0_i32_1 = arith.constant 0 : i32
    return %c0_i32, %c0_i32_0 : i32, i32
  }
  func.func @transform_5(%arg0: i32) -> (i32, i32) {
    %c0_i32 = arith.constant 0 : i32
    %c0_i32_0 = arith.constant 0 : i32
    %c0_i32_1 = arith.constant 0 : i32
    return %c0_i32, %c0_i32_0 : i32, i32
  }
  func.func @transform_6(%arg0: i32) -> (i32, i32) {
    %c0_i32 = arith.constant 0 : i32
    %c0_i32_0 = arith.constant 0 : i32
    %c0_i32_1 = arith.constant 0 : i32
    return %c0_i32, %c0_i32_0 : i32, i32
  }
  func.func @transform_7(%arg0: i32) -> (i32, i32) {
    %c0_i32 = arith.constant 0 : i32
    %c0_i32_0 = arith.constant 0 : i32
    %c0_i32_1 = arith.constant 0 : i32
    return %c0_i32, %c0_i32_0 : i32, i32
  }
  func.func @transform_8(%arg0: i32) -> (i32, i32) {
    %c0_i32 = arith.constant 0 : i32
    %c0_i32_0 = arith.constant 0 : i32
    %c0_i32_1 = arith.constant 0 : i32
    return %c0_i32, %c0_i32_0 : i32, i32
  }
  func.func @transform_9(%arg0: i32) -> (i32, i32) {
    %c0_i32 = arith.constant 0 : i32
    %c0_i32_0 = arith.constant 0 : i32
    %c0_i32_1 = arith.constant 0 : i32
    return %c0_i32, %c0_i32_0 : i32, i32
  }
  func.func @transform_10(%arg0: i32) -> (i32, i32) {
    %c0_i32 = arith.constant 0 : i32
    %c0_i32_0 = arith.constant 0 : i32
    %c0_i32_1 = arith.constant 0 : i32
    return %c0_i32, %c0_i32_0 : i32, i32
  }
  func.func @transform_11(%arg0: i32) -> (i32, i32) {
    %c0_i32 = arith.constant 0 : i32
    %c0_i32_0 = arith.constant 0 : i32
    %c0_i32_1 = arith.constant 0 : i32
    return %c0_i32, %c0_i32_0 : i32, i32
  }
  func.func @transform_12(%arg0: i32) -> (i32, i32) {
    %c0_i32 = arith.constant 0 : i32
    %c0_i32_0 = arith.constant 0 : i32
    %c0_i32_1 = arith.constant 0 : i32
    return %c0_i32, %c0_i32_0 : i32, i32
  }
  func.func @transform_13(%arg0: i32) -> (i32, i32) {
    %c0_i32 = arith.constant 0 : i32
    %c0_i32_0 = arith.constant 0 : i32
    %c0_i32_1 = arith.constant 0 : i32
    return %c0_i32, %c0_i32_0 : i32, i32
  }
  func.func @transform_14(%arg0: i32) -> (i32, i32) {
    %c0_i32 = arith.constant 0 : i32
    %c0_i32_0 = arith.constant 0 : i32
    %c0_i32_1 = arith.constant 0 : i32
    return %c0_i32, %c0_i32_0 : i32, i32
  }
  func.func @transform_15(%arg0: i32) -> (i32, i32) {
    %c0_i32 = arith.constant 0 : i32
    %c0_i32_0 = arith.constant 0 : i32
    %c0_i32_1 = arith.constant 0 : i32
    return %c0_i32, %c0_i32_0 : i32, i32
  }
  func.func @transform_16(%arg0: i32) -> (i32, i32) {
    %c0_i32 = arith.constant 0 : i32
    %c0_i32_0 = arith.constant 0 : i32
    %c0_i32_1 = arith.constant 0 : i32
    return %c0_i32, %c0_i32_0 : i32, i32
  }
  func.func @transform_17(%arg0: i32) -> (i32, i32, i32) {
    %c0_i32 = arith.constant 0 : i32
    %c0_i32_0 = arith.constant 0 : i32
    %c0_i32_1 = arith.constant 0 : i32
    return %arg0, %c0_i32, %c0_i32_0 : i32, i32, i32
  }
}

</mosaic_0001>

<llo_original>
// kernel: tpu_custom_call.1
$region0: #{tpu_custom_call.1}
  #allocation0 [shape = 'u32[]', space=smem, size = 0x4, offset = 0x4, fixed_abs, tag = 'smem constant byte address 0x4 - core index']
  #allocation1 [shape = 'u32[144,128]{1,0:T(1,128)}', space=vmem, size = 0x12000, scoped, tag = 'internal scratch']
  #allocation2 [shape = 'f32[4,512]{1,0:T(4,128)}', space=vmem, size = 0x2000, scoped, tag = 'scratch operand']
  #allocation3 [shape = 'f32[36,256]{1,0:T(8,128)}', space=vmem, size = 0xa000, scoped, tag = 'scratch operand']
  #allocation4 [shape = 'f32[8,256]{1,0:T(8,128)}', space=vmem, size = 0x2000, scoped, tag = 'scratch operand']
  %s0 = inlined_call_operand.vmem [shape: f32[2,4,256], index: 0, kind: input, shape index: {}]
  %s1 = inlined_call_operand.vmem [shape: f32[1,256], index: 1, kind: input, shape index: {}]
  %s2 = inlined_call_operand.vmem [shape: f32[1,256], index: 2, kind: input, shape index: {}]
  %s3 = inlined_call_operand.vmem [shape: f32[4,36], index: 3, kind: input, shape index: {}]
  %s4 = inlined_call_operand.vmem [shape: f32[4,1], index: 4, kind: input, shape index: {}]
  %s5 = inlined_call_operand.vmem [shape: f32[4,36], index: 5, kind: input, shape index: {}]
  %s6 = inlined_call_operand.vmem [shape: f32[4,1], index: 6, kind: input, shape index: {}]
  %s7 = inlined_call_operand.vmem [shape: f32[2,4], index: 7, kind: input, shape index: {}]
  %s8 = inlined_call_operand.vmem [shape: f32[2,1], index: 8, kind: input, shape index: {}]
  %s9 = inlined_call_operand.vmem [shape: f32[4,2], index: 9, kind: input, shape index: {}]
  %s10 = inlined_call_operand.vmem [shape: f32[4,1], index: 10, kind: input, shape index: {}]
  %s11 = inlined_call_operand.vmem [shape: f32[8,4], index: 11, kind: input, shape index: {}]
  %s12 = inlined_call_operand.vmem [shape: f32[8,1], index: 12, kind: input, shape index: {}]
  %s13 = inlined_call_operand.vmem [shape: f32[4,8], index: 13, kind: input, shape index: {}]
  %s14 = inlined_call_operand.vmem [shape: f32[4,1], index: 14, kind: input, shape index: {}]
  %s15 = inlined_call_operand.vmem [shape: f32[4,8], index: 15, kind: input, shape index: {}]
  %s16 = inlined_call_operand.vmem [shape: f32[4,1], index: 16, kind: input, shape index: {}]
  %s17 = inlined_call_operand.hbm [shape: f32[2,4,256], index: 17, kind: output, shape index: {}]
  %s18 = sld [smem:[#allocation0]]
  $region101: #{tpu_custom_call.1} parent=0
    _
  %s20 = ssub.s32 1, %s18
  %s21 = scalar_select 0, %s20, %s18
  $region1: #{tpu_custom_call.1} parent=0
    #allocation5 [shape = 'u8[8192]{0}', space=vmem, size = 0x2000, scoped, tag = 'output window, operand 0']
    #allocation6 [shape = 's32[2]{0}', space=sflag, size = 0x8, scoped, tag = 'scoped memory for tpu_custom_call.1']
    %22 = vsyncpa [#allocation6], 0
    %s23 = scalar_lea.sflag [#allocation6], 1
    %24 = vsyncpa %s23, 0
    loop: start=0, step=1, limit=4
    $region2: #{tpu_custom_call.1} parent=1 // loop_pre_header
      _
    $region3: #{tpu_custom_call.1} parent=1 // loop_header
      %s26 = sphi 0, %s30
      %p27 = scmp.ge.s32.totalorder %s26, 4
      %s36 = sphi 0, %s38
      %s39 = sphi 0, %s36
      %s40 = sphi 0, %s39
      %s56 = sphi 0, %s40
      %s60 = sphi 0, %s60
      %s62 = sphi 0, %s60
      %s63 = sphi 0, %s62
      %s77 = sphi 0, %s63
      %s81 = sphi 0, %s81
      %s83 = sphi 0, %s81
      %s84 = sphi 0, %s83
      %s98 = sphi 0, %s84
      %s102 = sphi 0, %s102
      %s104 = sphi 0, %s102
      %s105 = sphi 0, %s104
      %s119 = sphi 0, %s105
      %s123 = sphi 0, %s123
      %s125 = sphi 0, %s123
      %s126 = sphi 0, %s125
      %s140 = sphi 0, %s126
      %s144 = sphi 0, %s144
      %s146 = sphi 0, %s144
      %s147 = sphi 0, %s146
      %s161 = sphi 0, %s147
      %s165 = sphi 0, %s165
      %s167 = sphi 0, %s165
      %s168 = sphi 0, %s167
      %s182 = sphi 0, %s168
      %s186 = sphi 0, %s186
      %s188 = sphi 0, %s186
      %s189 = sphi 0, %s188
      %s203 = sphi 0, %s189
      %s207 = sphi 0, %s207
      %s209 = sphi 0, %s207
      %s210 = sphi 0, %s209
      %s224 = sphi 0, %s210
      %s228 = sphi 0, %s228
      %s230 = sphi 0, %s228
      %s231 = sphi 0, %s230
      %s245 = sphi 0, %s231
      %s249 = sphi 0, %s249
      %s251 = sphi 0, %s249
      %s252 = sphi 0, %s251
      %s266 = sphi 0, %s252
      %s270 = sphi 0, %s270
      %s272 = sphi 0, %s270
      %s273 = sphi 0, %s272
      %s287 = sphi 0, %s273
      %s291 = sphi 0, %s291
      %s293 = sphi 0, %s291
      %s294 = sphi 0, %s293
      %s308 = sphi 0, %s294
      %s312 = sphi 0, %s312
      %s314 = sphi 0, %s312
      %s315 = sphi 0, %s314
      %s329 = sphi 0, %s315
      %s333 = sphi 0, %s333
      %s335 = sphi 0, %s333
      %s336 = sphi 0, %s335
      %s350 = sphi 0, %s336
      %s354 = sphi 0, %s354
      %s356 = sphi 0, %s354
      %s357 = sphi 0, %s356
      %s371 = sphi 0, %s357
      %s375 = sphi 0, %s375
      %s377 = sphi 0, %s375
      %s378 = sphi 0, %s377
      %s392 = sphi 0, %s378
      %s398 = sphi 0, %s400
      %s401 = sphi 0, %s398
      %s402 = sphi 0, %s401
      %s418 = sphi 0, %s402
    $region4: #{tpu_custom_call.1} parent=1 // loop_header_branch
      %29 = sbr.rel (%p27) target = $region8
    $region5: #{tpu_custom_call.1} parent=1 // loop_body
      %s31 = ssub.s32 %s26, 1
      %s32 = ssub.s32 %s26, 2
      %s33 = sadd.s32 %s26, 1
      %s34 = ssub.s32 %s26, %s33
      %p35 = scmp.eq.s32.totalorder %s34, 0
      %s37 = sadd.s32 %s36, 1
      %s38 = scalar_select %p35, %s36, %s37
      %p41 = pneg %p35
      %p42 = scmp.eq.s32.totalorder %s26, 1
      %p43 = por %p41, %p42
      %p44 = scmp.ne.s32.totalorder %s36, %s39
      %p45 = scmp.eq.s32.totalorder %s26, 0
      %p46 = por %p44, %p45
      %p47 = scmp.ne.s32.totalorder %s36, %s39
      %p48 = scmp.eq.s32.totalorder %s31, 1
      %p49 = por %p47, %p48
      %p50 = scmp.ne.s32.totalorder %s39, %s40
      %p51 = scmp.eq.s32.totalorder %s31, 0
      %p52 = por %p50, %p51
      %p53 = scmp.ne.s32.totalorder %s39, %s40
      %p54 = scmp.eq.s32.totalorder %s32, 1
      %p55 = por %p53, %p54
      %p57 = scmp.ne.s32.totalorder %s40, %s56
      %p58 = scmp.eq.s32.totalorder %s32, 0
      %p59 = por %p57, %p58
      %s61 = sadd.s32 %s60, 1
      %p64 = scmp.eq.s32.totalorder %s26, 1
      %p65 = scmp.ne.s32.totalorder %s60, %s62
      %p66 = scmp.eq.s32.totalorder %s26, 0
      %p67 = por %p65, %p66
      %p68 = scmp.ne.s32.totalorder %s60, %s62
      %p69 = scmp.eq.s32.totalorder %s31, 1
      %p70 = por %p68, %p69
      %p71 = scmp.ne.s32.totalorder %s62, %s63
      %p72 = scmp.eq.s32.totalorder %s31, 0
      %p73 = por %p71, %p72
      %p74 = scmp.ne.s32.totalorder %s62, %s63
      %p75 = scmp.eq.s32.totalorder %s32, 1
      %p76 = por %p74, %p75
      %p78 = scmp.ne.s32.totalorder %s63, %s77
      %p79 = scmp.eq.s32.totalorder %s32, 0
      %p80 = por %p78, %p79
      %s82 = sadd.s32 %s81, 1
      %p85 = scmp.eq.s32.totalorder %s26, 1
      %p86 = scmp.ne.s32.totalorder %s81, %s83
      %p87 = scmp.eq.s32.totalorder %s26, 0
      %p88 = por %p86, %p87
      %p89 = scmp.ne.s32.totalorder %s81, %s83
      %p90 = scmp.eq.s32.totalorder %s31, 1
      %p91 = por %p89, %p90
      %p92 = scmp.ne.s32.totalorder %s83, %s84
      %p93 = scmp.eq.s32.totalorder %s31, 0
      %p94 = por %p92, %p93
      %p95 = scmp.ne.s32.totalorder %s83, %s84
      %p96 = scmp.eq.s32.totalorder %s32, 1
      %p97 = por %p95, %p96
      %p99 = scmp.ne.s32.totalorder %s84, %s98
      %p100 = scmp.eq.s32.totalorder %s32, 0
      %p101 = por %p99, %p100
      %s103 = sadd.s32 %s102, 1
      %p106 = scmp.eq.s32.totalorder %s26, 1
      %p107 = scmp.ne.s32.totalorder %s102, %s104
      %p108 = scmp.eq.s32.totalorder %s26, 0
      %p109 = por %p107, %p108
      %p110 = scmp.ne.s32.totalorder %s102, %s104
      %p111 = scmp.eq.s32.totalorder %s31, 1
      %p112 = por %p110, %p111
      %p113 = scmp.ne.s32.totalorder %s104, %s105
      %p114 = scmp.eq.s32.totalorder %s31, 0
      %p115 = por %p113, %p114
      %p116 = scmp.ne.s32.totalorder %s104, %s105
      %p117 = scmp.eq.s32.totalorder %s32, 1
      %p118 = por %p116, %p117
      %p120 = scmp.ne.s32.totalorder %s105, %s119
      %p121 = scmp.eq.s32.totalorder %s32, 0
      %p122 = por %p120, %p121
      %s124 = sadd.s32 %s123, 1
      %p127 = scmp.eq.s32.totalorder %s26, 1
      %p128 = scmp.ne.s32.totalorder %s123, %s125
      %p129 = scmp.eq.s32.totalorder %s26, 0
      %p130 = por %p128, %p129
      %p131 = scmp.ne.s32.totalorder %s123, %s125
      %p132 = scmp.eq.s32.totalorder %s31, 1
      %p133 = por %p131, %p132
      %p134 = scmp.ne.s32.totalorder %s125, %s126
      %p135 = scmp.eq.s32.totalorder %s31, 0
      %p136 = por %p134, %p135
      %p137 = scmp.ne.s32.totalorder %s125, %s126
      %p138 = scmp.eq.s32.totalorder %s32, 1
      %p139 = por %p137, %p138
      %p141 = scmp.ne.s32.totalorder %s126, %s140
      %p142 = scmp.eq.s32.totalorder %s32, 0
      %p143 = por %p141, %p142
      %s145 = sadd.s32 %s144, 1
      %p148 = scmp.eq.s32.totalorder %s26, 1
      %p149 = scmp.ne.s32.totalorder %s144, %s146
      %p150 = scmp.eq.s32.totalorder %s26, 0
      %p151 = por %p149, %p150
      %p152 = scmp.ne.s32.totalorder %s144, %s146
      %p153 = scmp.eq.s32.totalorder %s31, 1
      %p154 = por %p152, %p153
      %p155 = scmp.ne.s32.totalorder %s146, %s147
      %p156 = scmp.eq.s32.totalorder %s31, 0
      %p157 = por %p155, %p156
      %p158 = scmp.ne.s32.totalorder %s146, %s147
      %p159 = scmp.eq.s32.totalorder %s32, 1
      %p160 = por %p158, %p159
      %p162 = scmp.ne.s32.totalorder %s147, %s161
      %p163 = scmp.eq.s32.totalorder %s32, 0
      %p164 = por %p162, %p163
      %s166 = sadd.s32 %s165, 1
      %p169 = scmp.eq.s32.totalorder %s26, 1
      %p170 = scmp.ne.s32.totalorder %s165, %s167
      %p171 = scmp.eq.s32.totalorder %s26, 0
      %p172 = por %p170, %p171
      %p173 = scmp.ne.s32.totalorder %s165, %s167
      %p174 = scmp.eq.s32.totalorder %s31, 1
      %p175 = por %p173, %p174
      %p176 = scmp.ne.s32.totalorder %s167, %s168
      %p177 = scmp.eq.s32.totalorder %s31, 0
      %p178 = por %p176, %p177
      %p179 = scmp.ne.s32.totalorder %s167, %s168
      %p180 = scmp.eq.s32.totalorder %s32, 1
      %p181 = por %p179, %p180
      %p183 = scmp.ne.s32.totalorder %s168, %s182
      %p184 = scmp.eq.s32.totalorder %s32, 0
      %p185 = por %p183, %p184
      %s187 = sadd.s32 %s186, 1
      %p190 = scmp.eq.s32.totalorder %s26, 1
      %p191 = scmp.ne.s32.totalorder %s186, %s188
      %p192 = scmp.eq.s32.totalorder %s26, 0
      %p193 = por %p191, %p192
      %p194 = scmp.ne.s32.totalorder %s186, %s188
      %p195 = scmp.eq.s32.totalorder %s31, 1
      %p196 = por %p194, %p195
      %p197 = scmp.ne.s32.totalorder %s188, %s189
      %p198 = scmp.eq.s32.totalorder %s31, 0
      %p199 = por %p197, %p198
      %p200 = scmp.ne.s32.totalorder %s188, %s189
      %p201 = scmp.eq.s32.totalorder %s32, 1
      %p202 = por %p200, %p201
      %p204 = scmp.ne.s32.totalorder %s189, %s203
      %p205 = scmp.eq.s32.totalorder %s32, 0
      %p206 = por %p204, %p205
      %s208 = sadd.s32 %s207, 1
      %p211 = scmp.eq.s32.totalorder %s26, 1
      %p212 = scmp.ne.s32.totalorder %s207, %s209
      %p213 = scmp.eq.s32.totalorder %s26, 0
      %p214 = por %p212, %p213
      %p215 = scmp.ne.s32.totalorder %s207, %s209
      %p216 = scmp.eq.s32.totalorder %s31, 1
      %p217 = por %p215, %p216
      %p218 = scmp.ne.s32.totalorder %s209, %s210
      %p219 = scmp.eq.s32.totalorder %s31, 0
      %p220 = por %p218, %p219
      %p221 = scmp.ne.s32.totalorder %s209, %s210
      %p222 = scmp.eq.s32.totalorder %s32, 1
      %p223 = por %p221, %p222
      %p225 = scmp.ne.s32.totalorder %s210, %s224
      %p226 = scmp.eq.s32.totalorder %s32, 0
      %p227 = por %p225, %p226
      %s229 = sadd.s32 %s228, 1
      %p232 = scmp.eq.s32.totalorder %s26, 1
      %p233 = scmp.ne.s32.totalorder %s228, %s230
      %p234 = scmp.eq.s32.totalorder %s26, 0
      %p235 = por %p233, %p234
      %p236 = scmp.ne.s32.totalorder %s228, %s230
      %p237 = scmp.eq.s32.totalorder %s31, 1
      %p238 = por %p236, %p237
      %p239 = scmp.ne.s32.totalorder %s230, %s231
      %p240 = scmp.eq.s32.totalorder %s31, 0
      %p241 = por %p239, %p240
      %p242 = scmp.ne.s32.totalorder %s230, %s231
      %p243 = scmp.eq.s32.totalorder %s32, 1
      %p244 = por %p242, %p243
      %p246 = scmp.ne.s32.totalorder %s231, %s245
      %p247 = scmp.eq.s32.totalorder %s32, 0
      %p248 = por %p246, %p247
      %s250 = sadd.s32 %s249, 1
      %p253 = scmp.eq.s32.totalorder %s26, 1
      %p254 = scmp.ne.s32.totalorder %s249, %s251
      %p255 = scmp.eq.s32.totalorder %s26, 0
      %p256 = por %p254, %p255
      %p257 = scmp.ne.s32.totalorder %s249, %s251
      %p258 = scmp.eq.s32.totalorder %s31, 1
      %p259 = por %p257, %p258
      %p260 = scmp.ne.s32.totalorder %s251, %s252
      %p261 = scmp.eq.s32.totalorder %s31, 0
      %p262 = por %p260, %p261
      %p263 = scmp.ne.s32.totalorder %s251, %s252
      %p264 = scmp.eq.s32.totalorder %s32, 1
      %p265 = por %p263, %p264
      %p267 = scmp.ne.s32.totalorder %s252, %s266
      %p268 = scmp.eq.s32.totalorder %s32, 0
      %p269 = por %p267, %p268
      %s271 = sadd.s32 %s270, 1
      %p274 = scmp.eq.s32.totalorder %s26, 1
      %p275 = scmp.ne.s32.totalorder %s270, %s272
      %p276 = scmp.eq.s32.totalorder %s26, 0
      %p277 = por %p275, %p276
      %p278 = scmp.ne.s32.totalorder %s270, %s272
      %p279 = scmp.eq.s32.totalorder %s31, 1
      %p280 = por %p278, %p279
      %p281 = scmp.ne.s32.totalorder %s272, %s273
      %p282 = scmp.eq.s32.totalorder %s31, 0
      %p283 = por %p281, %p282
      %p284 = scmp.ne.s32.totalorder %s272, %s273
      %p285 = scmp.eq.s32.totalorder %s32, 1
      %p286 = por %p284, %p285
      %p288 = scmp.ne.s32.totalorder %s273, %s287
      %p289 = scmp.eq.s32.totalorder %s32, 0
      %p290 = por %p288, %p289
      %s292 = sadd.s32 %s291, 1
      %p295 = scmp.eq.s32.totalorder %s26, 1
      %p296 = scmp.ne.s32.totalorder %s291, %s293
      %p297 = scmp.eq.s32.totalorder %s26, 0
      %p298 = por %p296, %p297
      %p299 = scmp.ne.s32.totalorder %s291, %s293
      %p300 = scmp.eq.s32.totalorder %s31, 1
      %p301 = por %p299, %p300
      %p302 = scmp.ne.s32.totalorder %s293, %s294
      %p303 = scmp.eq.s32.totalorder %s31, 0
      %p304 = por %p302, %p303
      %p305 = scmp.ne.s32.totalorder %s293, %s294
      %p306 = scmp.eq.s32.totalorder %s32, 1
      %p307 = por %p305, %p306
      %p309 = scmp.ne.s32.totalorder %s294, %s308
      %p310 = scmp.eq.s32.totalorder %s32, 0
      %p311 = por %p309, %p310
      %s313 = sadd.s32 %s312, 1
      %p316 = scmp.eq.s32.totalorder %s26, 1
      %p317 = scmp.ne.s32.totalorder %s312, %s314
      %p318 = scmp.eq.s32.totalorder %s26, 0
      %p319 = por %p317, %p318
      %p320 = scmp.ne.s32.totalorder %s312, %s314
      %p321 = scmp.eq.s32.totalorder %s31, 1
      %p322 = por %p320, %p321
      %p323 = scmp.ne.s32.totalorder %s314, %s315
      %p324 = scmp.eq.s32.totalorder %s31, 0
      %p325 = por %p323, %p324
      %p326 = scmp.ne.s32.totalorder %s314, %s315
      %p327 = scmp.eq.s32.totalorder %s32, 1
      %p328 = por %p326, %p327
      %p330 = scmp.ne.s32.totalorder %s315, %s329
      %p331 = scmp.eq.s32.totalorder %s32, 0
      %p332 = por %p330, %p331
      %s334 = sadd.s32 %s333, 1
      %p337 = scmp.eq.s32.totalorder %s26, 1
      %p338 = scmp.ne.s32.totalorder %s333, %s335
      %p339 = scmp.eq.s32.totalorder %s26, 0
      %p340 = por %p338, %p339
      %p341 = scmp.ne.s32.totalorder %s333, %s335
      %p342 = scmp.eq.s32.totalorder %s31, 1
      %p343 = por %p341, %p342
      %p344 = scmp.ne.s32.totalorder %s335, %s336
      %p345 = scmp.eq.s32.totalorder %s31, 0
      %p346 = por %p344, %p345
      %p347 = scmp.ne.s32.totalorder %s335, %s336
      %p348 = scmp.eq.s32.totalorder %s32, 1
      %p349 = por %p347, %p348
      %p351 = scmp.ne.s32.totalorder %s336, %s350
      %p352 = scmp.eq.s32.totalorder %s32, 0
      %p353 = por %p351, %p352
      %s355 = sadd.s32 %s354, 1
      %p358 = scmp.eq.s32.totalorder %s26, 1
      %p359 = scmp.ne.s32.totalorder %s354, %s356
      %p360 = scmp.eq.s32.totalorder %s26, 0
      %p361 = por %p359, %p360
      %p362 = scmp.ne.s32.totalorder %s354, %s356
      %p363 = scmp.eq.s32.totalorder %s31, 1
      %p364 = por %p362, %p363
      %p365 = scmp.ne.s32.totalorder %s356, %s357
      %p366 = scmp.eq.s32.totalorder %s31, 0
      %p367 = por %p365, %p366
      %p368 = scmp.ne.s32.totalorder %s356, %s357
      %p369 = scmp.eq.s32.totalorder %s32, 1
      %p370 = por %p368, %p369
      %p372 = scmp.ne.s32.totalorder %s357, %s371
      %p373 = scmp.eq.s32.totalorder %s32, 0
      %p374 = por %p372, %p373
      %s376 = sadd.s32 %s375, 1
      %p379 = scmp.eq.s32.totalorder %s26, 1
      %p380 = scmp.ne.s32.totalorder %s375, %s377
      %p381 = scmp.eq.s32.totalorder %s26, 0
      %p382 = por %p380, %p381
      %p383 = scmp.ne.s32.totalorder %s375, %s377
      %p384 = scmp.eq.s32.totalorder %s31, 1
      %p385 = por %p383, %p384
      %p386 = scmp.ne.s32.totalorder %s377, %s378
      %p387 = scmp.eq.s32.totalorder %s31, 0
      %p388 = por %p386, %p387
      %p389 = scmp.ne.s32.totalorder %s377, %s378
      %p390 = scmp.eq.s32.totalorder %s32, 1
      %p391 = por %p389, %p390
      %p393 = scmp.ne.s32.totalorder %s378, %s392
      %p394 = scmp.eq.s32.totalorder %s32, 0
      %p395 = por %p393, %p394
      %s396 = ssub.s32 %s26, %s33
      %p397 = scmp.eq.s32.totalorder %s396, 0
      %s399 = sadd.s32 %s398, 1
      %s400 = scalar_select %p397, %s398, %s399
      %p403 = pneg %p397
      %p404 = scmp.eq.s32.totalorder %s26, 1
      %p405 = por %p403, %p404
      %p406 = scmp.ne.s32.totalorder %s398, %s401
      %p407 = scmp.eq.s32.totalorder %s26, 0
      %p408 = por %p406, %p407
      %p409 = scmp.ne.s32.totalorder %s398, %s401
      %p410 = scmp.eq.s32.totalorder %s31, 1
      %p411 = por %p409, %p410
      %p412 = scmp.ne.s32.totalorder %s401, %s402
      %p413 = scmp.eq.s32.totalorder %s31, 0
      %p414 = por %p412, %p413
      %p415 = scmp.ne.s32.totalorder %s401, %s402
      %p416 = scmp.eq.s32.totalorder %s32, 1
      %p417 = por %p415, %p416
      %p419 = scmp.ne.s32.totalorder %s402, %s418
      %p420 = scmp.eq.s32.totalorder %s32, 0
      %p421 = por %p419, %p420
      %p422 = scmp.le.s32.totalorder 1, %s26
      %p423 = scmp.lt.s32.totalorder %s26, 3
      %p424 = pnand %p422, %p423
      %p425 = pneg %p424
      // Predicated region
      $region9: #{tpu_custom_call.1} parent=5 // pred_check
        _
      $region10: #{tpu_custom_call.1} parent=5 // pred_check_branch
        %427 = sbr.rel (%p424) target = $region12
      $region11: #{tpu_custom_call.1} parent=5 // pred_region
        %s428 = ssub.s32 %s26, 1
        // Predicated region
        $region13: #{tpu_custom_call.1} parent=11 // pred_check
          %p429 = pneg %p73
        $region14: #{tpu_custom_call.1} parent=11 // pred_check_branch
          %431 = sbr.rel (%p429) target = $region16
        $region15: #{tpu_custom_call.1} parent=11 // pred_region
          _
        $region16: #{tpu_custom_call.1} parent=11 // pred_fallthru
          _
        // Predicated region
        $region17: #{tpu_custom_call.1} parent=11 // pred_check
          %p432 = pneg %p94
        $region18: #{tpu_custom_call.1} parent=11 // pred_check_branch
          %434 = sbr.rel (%p432) target = $region20
        $region19: #{tpu_custom_call.1} parent=11 // pred_region
          _
        $region20: #{tpu_custom_call.1} parent=11 // pred_fallthru
          _
        // Predicated region
        $region21: #{tpu_custom_call.1} parent=11 // pred_check
          %p435 = pneg %p115
        $region22: #{tpu_custom_call.1} parent=11 // pred_check_branch
          %437 = sbr.rel (%p435) target = $region24
        $region23: #{tpu_custom_call.1} parent=11 // pred_region
          _
        $region24: #{tpu_custom_call.1} parent=11 // pred_fallthru
          _
        // Predicated region
        $region25: #{tpu_custom_call.1} parent=11 // pred_check
          %p438 = pneg %p136
        $region26: #{tpu_custom_call.1} parent=11 // pred_check_branch
          %440 = sbr.rel (%p438) target = $region28
        $region27: #{tpu_custom_call.1} parent=11 // pred_region
          _
        $region28: #{tpu_custom_call.1} parent=11 // pred_fallthru
          _
        // Predicated region
        $region29: #{tpu_custom_call.1} parent=11 // pred_check
          %p441 = pneg %p157
        $region30: #{tpu_custom_call.1} parent=11 // pred_check_branch
          %443 = sbr.rel (%p441) target = $region32
        $region31: #{tpu_custom_call.1} parent=11 // pred_region
          _
        $region32: #{tpu_custom_call.1} parent=11 // pred_fallthru
          _
        // Predicated region
        $region33: #{tpu_custom_call.1} parent=11 // pred_check
          %p444 = pneg %p178
        $region34: #{tpu_custom_call.1} parent=11 // pred_check_branch
          %446 = sbr.rel (%p444) target = $region36
        $region35: #{tpu_custom_call.1} parent=11 // pred_region
          _
        $region36: #{tpu_custom_call.1} parent=11 // pred_fallthru
          _
        // Predicated region
        $region37: #{tpu_custom_call.1} parent=11 // pred_check
          %p447 = pneg %p199
        $region38: #{tpu_custom_call.1} parent=11 // pred_check_branch
          %449 = sbr.rel (%p447) target = $region40
        $region39: #{tpu_custom_call.1} parent=11 // pred_region
          _
        $region40: #{tpu_custom_call.1} parent=11 // pred_fallthru
          _
        // Predicated region
        $region41: #{tpu_custom_call.1} parent=11 // pred_check
          %p450 = pneg %p220
        $region42: #{tpu_custom_call.1} parent=11 // pred_check_branch
          %452 = sbr.rel (%p450) target = $region44
        $region43: #{tpu_custom_call.1} parent=11 // pred_region
          _
        $region44: #{tpu_custom_call.1} parent=11 // pred_fallthru
          _
        // Predicated region
        $region45: #{tpu_custom_call.1} parent=11 // pred_check
          %p453 = pneg %p241
        $region46: #{tpu_custom_call.1} parent=11 // pred_check_branch
          %455 = sbr.rel (%p453) target = $region48
        $region47: #{tpu_custom_call.1} parent=11 // pred_region
          _
        $region48: #{tpu_custom_call.1} parent=11 // pred_fallthru
          _
        // Predicated region
        $region49: #{tpu_custom_call.1} parent=11 // pred_check
          %p456 = pneg %p262
        $region50: #{tpu_custom_call.1} parent=11 // pred_check_branch
          %458 = sbr.rel (%p456) target = $region52
        $region51: #{tpu_custom_call.1} parent=11 // pred_region
          _
        $region52: #{tpu_custom_call.1} parent=11 // pred_fallthru
          _
        // Predicated region
        $region53: #{tpu_custom_call.1} parent=11 // pred_check
          %p459 = pneg %p283
        $region54: #{tpu_custom_call.1} parent=11 // pred_check_branch
          %461 = sbr.rel (%p459) target = $region56
        $region55: #{tpu_custom_call.1} parent=11 // pred_region
          _
        $region56: #{tpu_custom_call.1} parent=11 // pred_fallthru
          _
        // Predicated region
        $region57: #{tpu_custom_call.1} parent=11 // pred_check
          %p462 = pneg %p304
        $region58: #{tpu_custom_call.1} parent=11 // pred_check_branch
          %464 = sbr.rel (%p462) target = $region60
        $region59: #{tpu_custom_call.1} parent=11 // pred_region
          _
        $region60: #{tpu_custom_call.1} parent=11 // pred_fallthru
          _
        // Predicated region
        $region61: #{tpu_custom_call.1} parent=11 // pred_check
          %p465 = pneg %p325
        $region62: #{tpu_custom_call.1} parent=11 // pred_check_branch
          %467 = sbr.rel (%p465) target = $region64
        $region63: #{tpu_custom_call.1} parent=11 // pred_region
          _
        $region64: #{tpu_custom_call.1} parent=11 // pred_fallthru
          _
        // Predicated region
        $region65: #{tpu_custom_call.1} parent=11 // pred_check
          %p468 = pneg %p346
        $region66: #{tpu_custom_call.1} parent=11 // pred_check_branch
          %470 = sbr.rel (%p468) target = $region68
        $region67: #{tpu_custom_call.1} parent=11 // pred_region
          _
        $region68: #{tpu_custom_call.1} parent=11 // pred_fallthru
          _
        // Predicated region
        $region69: #{tpu_custom_call.1} parent=11 // pred_check
          %p471 = pneg %p367
        $region70: #{tpu_custom_call.1} parent=11 // pred_check_branch
          %473 = sbr.rel (%p471) target = $region72
        $region71: #{tpu_custom_call.1} parent=11 // pred_region
          _
        $region72: #{tpu_custom_call.1} parent=11 // pred_fallthru
          _
        // Predicated region
        $region73: #{tpu_custom_call.1} parent=11 // pred_check
          %p474 = pneg %p388
        $region74: #{tpu_custom_call.1} parent=11 // pred_check_branch
          %476 = sbr.rel (%p474) target = $region76
        $region75: #{tpu_custom_call.1} parent=11 // pred_region
          _
        $region76: #{tpu_custom_call.1} parent=11 // pred_fallthru
          _
      $region12: #{tpu_custom_call.1} parent=5 // pred_fallthru
        _
      %p477 = scmp.lt.s32.totalorder %s26, 2
      // Predicated region
      $region77: #{tpu_custom_call.1} parent=5 // pred_check
        %p478 = pneg %p477
      $region78: #{tpu_custom_call.1} parent=5 // pred_check_branch
        %480 = sbr.rel (%p478) target = $region80
      $region79: #{tpu_custom_call.1} parent=5 // pred_region
        // Predicated region
        $region81: #{tpu_custom_call.1} parent=79 // pred_check
          %p481 = pneg %p46
        $region82: #{tpu_custom_call.1} parent=79 // pred_check_branch
          %483 = sbr.rel (%p481) target = $region84
        $region83: #{tpu_custom_call.1} parent=79 // pred_region
          %p484 = scmp.lt.s32.totalorder %s26, 1
          %s485 = scalar_select %p484, %s26, 1
          %s486 = smul.addr %s485, 2
          %s487 = smul.addr %s486, 4
          %s488 = scalar_lea.vmem %s0, %s487
        $region84: #{tpu_custom_call.1} parent=79 // pred_fallthru
          _
      $region80: #{tpu_custom_call.1} parent=5 // pred_fallthru
        _
      %p489 = scmp.le.s32.totalorder 1, %s26
      %p490 = scmp.lt.s32.totalorder %s26, 3
      %p491 = pnand %p489, %p490
      %p492 = pneg %p491
      // Predicated region
      $region85: #{tpu_custom_call.1} parent=5 // pred_check
        _
      $region86: #{tpu_custom_call.1} parent=5 // pred_check_branch
        %494 = sbr.rel (%p491) target = $region88
      $region87: #{tpu_custom_call.1} parent=5 // pred_region
        %s495 = ssub.s32 %s26, 1
        %p496 = scmp.lt.s32.totalorder %s31, 1
        %s497 = scalar_select %p496, %s31, 1
        %s498 = smul.addr %s497, 2
        %s499 = smul.addr %s498, 4
        %s500 = scalar_lea.vmem %s0, %s499
        %p501 = pneg %p52
        %p502 = pneg %p49
        %p503 = pneg %p73
        %p504 = pneg %p70
        %p505 = pneg %p94
        %p506 = pneg %p91
        %p507 = pneg %p115
        %p508 = pneg %p112
        %p509 = pneg %p136
        %p510 = pneg %p133
        %p511 = pneg %p157
        %p512 = pneg %p154
        %p513 = pneg %p178
        %p514 = pneg %p175
        %p515 = pneg %p199
        %p516 = pneg %p196
        %p517 = pneg %p220
        %p518 = pneg %p217
        %p519 = pneg %p241
        %p520 = pneg %p238
        %p521 = pneg %p262
        %p522 = pneg %p259
        %p523 = pneg %p283
        %p524 = pneg %p280
        %p525 = pneg %p304
        %p526 = pneg %p301
        %p527 = pneg %p325
        %p528 = pneg %p322
        %p529 = pneg %p346
        %p530 = pneg %p343
        %p531 = pneg %p367
        %p532 = pneg %p364
        %p533 = pneg %p388
        %p534 = pneg %p385
        %p535 = pneg %p414
        %p536 = pneg %p411
        %s537 = sand.u32 %s401, 1
        %s538 = scalar_lea.sflag [#allocation6], %s537
        %s539 = sand.u32 %s401, 1
        %s540 = smul.addr %s539, 8
        %s541 = scalar_lea.vmem [#allocation5], %s540
        %p542 = scmp.lt.s32.totalorder %s31, 1
        %s543 = scalar_select %p542, %s31, 1
        %s544 = smul.addr %s543, 2
        %s545 = smul.addr %s544, 4
        %s546 = scalar_lea.vmem %s0, %s545
        %547 = vst [vmem:[#allocation2] sm:$0xf] 0.0
        %548 = vst [vmem:[#allocation2 + $0xc] sm:$0xf] 0.0
        %v549 = vld [vmem:[%s546] sm:$0xff]
        %v550 = vld [vmem:[%s1] sm:$0x3]
        %v551 = vld [vmem:[%s2] sm:$0x3]
        %v552 = vld [vmem:[%s3] sm:$0xf]
        %v553 = vld [vmem:[%s4] sm:$0xf]
        %554 = vst [vmem:[#allocation2 + $0x4] sm:$0xff] %v549
        %v555 = vld [vmem:[#allocation2] sm:$0xff]
        %v556 = vld [vmem:[#allocation2 + $0x8] sm:$0xf]
        %v558 = vlaneseq
        %v559 = vshrl.u32 %v558, 7
        %v560 = vsub.s32 0, %v559
        %v561 = vrot.slane %v550, %v560
        %v562 = vlaneseq
        %v563 = vshrl.u32 %v562, 7
        %v564 = vsub.s32 1, %v563
        %v565 = vrot.slane %v550, %v564
        %v566 = vcombine.low %v561, %v565
        %567 = vrot.lane.b32.xlu0 %v566, 111
        %v568 = vpop.permute.xlu0 %567
        %v569 = vrot.slane %v568, 4
        %vm570 = vcmask 908288
        %v571 = vsel %vm570, %v569, %v568
        %v574 = vmul.f32 %v555, %v571
        %v575 = vmul.f32 %v556, %v569
        %v578 = vcombine.high %v574, %v574
        %579 = vrot.lane.b32.xlu0 %v574, 17
        %v580 = vpop.permute.xlu0 %579
        %581 = vrot.lane.b32.xlu0 %v578, 17
        %v582 = vpop.permute.xlu0 %581
        %583 = vrot.lane.b32.xlu0 %v575, 17
        %v584 = vpop.permute.xlu0 %583
        %vm585 = vcmask 138240
        %v586 = vsel %vm585, %v580, %v582
        %v587 = vsel %vm585, %v582, %v584
        %590 = vst [vmem:[#allocation3] sm:$0xf] %v586
        %591 = vst [vmem:[#allocation3 + $0x8] sm:$0xf] %v587
        %v592 = vld [vmem:[#allocation2] sm:$0xff]
        %v593 = vld [vmem:[#allocation2 + $0x8] sm:$0xf]
        %v596 = vcombine.low %v592, %v592
        %v597 = vcombine.low %v593, %v593
        %598 = vrot.lane.b32.xlu0 %v596, 16
        %v599 = vpop.permute.xlu0 %598
        %600 = vrot.lane.b32.xlu0 %v592, 16
        %v601 = vpop.permute.xlu0 %600
        %602 = vrot.lane.b32.xlu0 %v597, 16
        %v603 = vpop.permute.xlu0 %602
        %vm604 = vcmask 130048
        %v605 = vsel %vm604, %v599, %v601
        %v606 = vsel %vm604, %v601, %v603
        %609 = vst [vmem:[#allocation3] sm:$0xf0] %v605
        %610 = vst [vmem:[#allocation3 + $0x8] sm:$0xf0] %v606
        %v611 = vld [vmem:[#allocation2] sm:$0xff]
        %v612 = vld [vmem:[#allocation2 + $0x8] sm:$0xf]
        %v614 = vlaneseq
        %v615 = vshrl.u32 %v614, 7
        %v616 = vsub.s32 0, %v615
        %v617 = vrot.slane %v551, %v616
        %v618 = vlaneseq
        %v619 = vshrl.u32 %v618, 7
        %v620 = vsub.s32 1, %v619
        %v621 = vrot.slane %v551, %v620
        %v622 = vcombine.low %v617, %v621
        %623 = vrot.lane.b32.xlu0 %v622, 113
        %v624 = vpop.permute.xlu0 %623
        %v625 = vrot.slane %v624, 4
        %vm626 = vcmask 924672
        %v627 = vsel %vm626, %v625, %v624
        %v630 = vmul.f32 %v611, %v627
        %v631 = vmul.f32 %v612, %v625
        %v634 = vcombine.high %v630, %v630
        %635 = vrot.lane.b32.xlu0 %v630, 15
        %v636 = vpop.permute.xlu0 %635
        %637 = vrot.lane.b32.xlu0 %v634, 15
        %v638 = vpop.permute.xlu0 %637
        %639 = vrot.lane.b32.xlu0 %v631, 15
        %v640 = vpop.permute.xlu0 %639
        %vm641 = vcmask 121856
        %v642 = vsel %vm641, %v636, %v638
        %v643 = vsel %vm641, %v638, %v640
        %646 = vst [vmem:[#allocation3 + $0x10] sm:$0xf] %v642
        %647 = vst [vmem:[#allocation3 + $0x18] sm:$0xf] %v643
        %v648 = vld [vmem:[#allocation2] sm:$0xff]
        %v649 = vld [vmem:[#allocation2 + $0x8] sm:$0xf]
        %650 = vrot.lane.b32.xlu0 %v566, 127
        %v651 = vpop.permute.xlu0 %650
        %v652 = vrot.slane %v651, 4
        %vm653 = vcmask 1039360
        %v654 = vsel %vm653, %v652, %v651
        %v657 = vmul.f32 %v648, %v654
        %v658 = vmul.f32 %v649, %v652
        %v661 = vcombine.low %v657, %v657
        %v662 = vcombine.low %v658, %v658
        %663 = vrot.lane.b32.xlu0 %v661, 1
        %v664 = vpop.permute.xlu0 %663
        %665 = vrot.lane.b32.xlu0 %v657, 1
        %v666 = vpop.permute.xlu0 %665
        %667 = vrot.lane.b32.xlu0 %v662, 1
        %v668 = vpop.permute.xlu0 %667
        %vm669 = vcmask 7168
        %v670 = vsel %vm669, %v664, %v666
        %v671 = vsel %vm669, %v666, %v668
        %674 = vst [vmem:[#allocation3 + $0x10] sm:$0xf0] %v670
        %675 = vst [vmem:[#allocation3 + $0x18] sm:$0xf0] %v671
        %v676 = vld [vmem:[#allocation2 + $0x4] sm:$0xff]
        %v678 = vcombine.high %v676, %v676
        %680 = vst [vmem:[#allocation3 + $0x20] sm:$0xf] %v676
        %681 = vst [vmem:[#allocation3 + $0x28] sm:$0xf] %v678
        %v682 = vld [vmem:[#allocation2 + $0x4] sm:$0xff]
        %v683 = vld [vmem:[#allocation2 + $0xc] sm:$0xf]
        %684 = vrot.lane.b32.xlu0 %v622, 1
        %v685 = vpop.permute.xlu0 %684
        %v686 = vrot.slane %v685, 4
        %v687 = vsel %vm669, %v686, %v685
        %v690 = vmul.f32 %v682, %v687
        %v691 = vmul.f32 %v683, %v686
        %v694 = vcombine.low %v690, %v690
        %v695 = vcombine.low %v691, %v691
        %696 = vrot.lane.b32.xlu0 %v694, 127
        %v697 = vpop.permute.xlu0 %696
        %698 = vrot.lane.b32.xlu0 %v690, 127
        %v699 = vpop.permute.xlu0 %698
        %700 = vrot.lane.b32.xlu0 %v695, 127
        %v701 = vpop.permute.xlu0 %700
        %v702 = vsel %vm653, %v697, %v699
        %v703 = vsel %vm653, %v699, %v701
        %706 = vst [vmem:[#allocation3 + $0x20] sm:$0xf0] %v702
        %707 = vst [vmem:[#allocation3 + $0x28] sm:$0xf0] %v703
        %v708 = vld [vmem:[#allocation2 + $0x4] sm:$0xff]
        %v709 = vld [vmem:[#allocation2 + $0xc] sm:$0xf]
        %710 = vrot.lane.b32.xlu0 %v566, 15
        %v711 = vpop.permute.xlu0 %710
        %v712 = vrot.slane %v711, 4
        %v713 = vsel %vm641, %v712, %v711
        %v716 = vmul.f32 %v708, %v713
        %v717 = vmul.f32 %v709, %v712
        %v720 = vcombine.high %v716, %v716
        %721 = vrot.lane.b32.xlu0 %v716, 113
        %v722 = vpop.permute.xlu0 %721
        %723 = vrot.lane.b32.xlu0 %v720, 113
        %v724 = vpop.permute.xlu0 %723
        %725 = vrot.lane.b32.xlu0 %v717, 113
        %v726 = vpop.permute.xlu0 %725
        %v727 = vsel %vm626, %v722, %v724
        %v728 = vsel %vm626, %v724, %v726
        %731 = vst [vmem:[#allocation3 + $0x30] sm:$0xf] %v727
        %732 = vst [vmem:[#allocation3 + $0x38] sm:$0xf] %v728
        %v733 = vld [vmem:[#allocation2 + $0x4] sm:$0xff]
        %v734 = vld [vmem:[#allocation2 + $0xc] sm:$0xf]
        %v737 = vcombine.low %v733, %v733
        %v738 = vcombine.low %v734, %v734
        %739 = vrot.lane.b32.xlu0 %v737, 112
        %v740 = vpop.permute.xlu0 %739
        %741 = vrot.lane.b32.xlu0 %v733, 112
        %v742 = vpop.permute.xlu0 %741
        %743 = vrot.lane.b32.xlu0 %v738, 112
        %v744 = vpop.permute.xlu0 %743
        %vm745 = vcmask 916480
        %v746 = vsel %vm745, %v740, %v742
        %v747 = vsel %vm745, %v742, %v744
        %750 = vst [vmem:[#allocation3 + $0x30] sm:$0xf0] %v746
        %751 = vst [vmem:[#allocation3 + $0x38] sm:$0xf0] %v747
        %v752 = vld [vmem:[#allocation2 + $0x4] sm:$0xff]
        %v753 = vld [vmem:[#allocation2 + $0xc] sm:$0xf]
        %754 = vrot.lane.b32.xlu0 %v622, 17
        %v755 = vpop.permute.xlu0 %754
        %v756 = vrot.slane %v755, 4
        %v757 = vsel %vm585, %v756, %v755
        %v760 = vmul.f32 %v752, %v757
        %v761 = vmul.f32 %v753, %v756
        %v764 = vcombine.high %v760, %v760
        %765 = vrot.lane.b32.xlu0 %v760, 111
        %v766 = vpop.permute.xlu0 %765
        %767 = vrot.lane.b32.xlu0 %v764, 111
        %v768 = vpop.permute.xlu0 %767
        %769 = vrot.lane.b32.xlu0 %v761, 111
        %v770 = vpop.permute.xlu0 %769
        %v771 = vsel %vm570, %v766, %v768
        %v772 = vsel %vm570, %v768, %v770
        %775 = vst [vmem:[#allocation3 + $0x40] sm:$0xf] %v771
        %776 = vst [vmem:[#allocation3 + $0x48] sm:$0xf] %v772
        %v777 = vld [vmem:[#allocation3] sm:$0xff]
        %v778 = vld [vmem:[#allocation3 + $0x8] sm:$0xff]
        %v779 = vld [vmem:[#allocation3 + $0x10] sm:$0xff]
        %v780 = vld [vmem:[#allocation3 + $0x18] sm:$0xff]
        %v781 = vld [vmem:[#allocation3 + $0x20] sm:$0xff]
        %v782 = vld [vmem:[#allocation3 + $0x28] sm:$0xff]
        %v783 = vld [vmem:[#allocation3 + $0x30] sm:$0xff]
        %v784 = vld [vmem:[#allocation3 + $0x38] sm:$0xff]
        %v785 = vld [vmem:[#allocation3 + $0x40] sm:$0xf]
        %v786 = vld [vmem:[#allocation3 + $0x48] sm:$0xf]
        %788 = vset.pattern.permute.xlu0 0
        %789 = vperm.xlu0 %788, %v553
        %v790 = vpop.permute.xlu0 %789
        %vm792 = vcmask 293888
        %v794 = vsel %vm792, %v552, 0
        %vm796 = vcmask 1043456
        %v798 = vsel %vm796, %v785, 0
        %v801 = vsel %vm796, %v786, 0
        %803 = vmatprep.subr.mxu0 %v778
        %804 = vmatpush1.msra.mxu0 %v777
        %805 = vmatprep.subr.mxu0 %v780
        %806 = vmatpush1.msra.mxu0 %v779
        %807 = vmatprep.subr.mxu0 %v782
        %808 = vmatpush1.msra.mxu0 %v781
        %809 = vmatprep.subr.mxu0 %v784
        %810 = vmatpush1.msra.mxu0 %v783
        %811 = vmatprep.subr.mxu0 %v801
        %812 = vmatpush1.msra.mxu0 %v798
        %813 = vmatprep.subr.mxu0 0.0
        %814 = vmatpush1.msra.mxu0 0.0
        %815 = vmatprep.subr.mxu0 0.0
        %816 = vmatpush1.msra.mxu0 0.0
        %817 = vmatprep.subr.mxu0 0.0
        %818 = vmatpush1.msra.mxu0 0.0
        %819 = vmatprep.subr.mxu0 0.0
        %820 = vmatpush1.msra.mxu0 0.0
        %821 = vmatprep.subr.mxu0 0.0
        %822 = vmatpush1.msra.mxu0 0.0
        %823 = vmatprep.subr.mxu0 0.0
        %824 = vmatpush1.msra.mxu0 0.0
        %825 = vmatprep.subr.mxu0 0.0
        %826 = vmatpush1.msra.mxu0 0.0
        %827 = vmatprep.subr.mxu0 0.0
        %828 = vmatpush1.msra.mxu0 0.0
        %829 = vmatprep.subr.mxu0 0.0
        %830 = vmatpush1.msra.mxu0 0.0
        %831 = vmatprep.subr.mxu0 0.0
        %832 = vmatpush1.msra.mxu0 0.0
        %833 = vmatprep.subr.mxu0 0.0
        %834 = vmatpush1.msra.mxu0 0.0
        %835 = vmatprep.subr.mxu0 0.0
        %836 = vmatpush1.msra.mxu0 0.0
        %837 = vmatprep.subr.mxu0 0.0
        %838 = vmatpush1.msra.mxu0 0.0
        %839 = vmatprep.subr.mxu0 0.0
        %840 = vmatpush1.msra.mxu0 0.0
        %841 = vmatprep.subr.mxu0 0.0
        %842 = vmatpush1.msra.mxu0 0.0
        %843 = vmatprep.subr.mxu0 0.0
        %844 = vmatpush1.msra.mxu0 0.0
        %845 = vmatprep.subr.mxu0 0.0
        %846 = vmatpush1.msra.mxu0 0.0
        %847 = vmatprep.subr.mxu0 0.0
        %848 = vmatpush1.msra.mxu0 0.0
        %849 = vmatprep.subr.mxu0 0.0
        %850 = vmatpush1.msra.mxu0 0.0
        %851 = vmatprep.subr.mxu0 0.0
        %852 = vmatpush1.msra.mxu0 0.0
        %853 = vmatprep.subr.mxu0 0.0
        %854 = vmatpush1.msra.mxu0 0.0
        %855 = vmatprep.subr.mxu0 0.0
        %856 = vmatpush1.msra.mxu0 0.0
        %857 = vmatprep.subr.mxu0 0.0
        %858 = vmatpush1.msra.mxu0 0.0
        %859 = vmatprep.subr.mxu0 0.0
        %860 = vmatpush1.msra.mxu0 0.0
        %861 = vmatprep.subr.mxu0 0.0
        %862 = vmatpush1.msra.mxu0 0.0
        %863 = vmatprep.subr.mxu0 0.0
        %864 = vmatpush1.msra.mxu0 0.0
        %865 = vmatprep.subr.mxu0 0.0
        %866 = vmatpush1.msra.mxu0 0.0
        %867 = vmatprep.mubr.f32.mxu0 0.0
        %868 = vmatmul.mubr.f32.gmra.mrb[0].mxu0 %v794
        %v869 = vpop.f32.mrb[0].mxu0
        %v870 = vadd.f32 %v790, %v869
        %v871 = vpop.f32.mrb[0].mxu0
        %v872 = vadd.f32 %v790, %v871
        %873 = vdwg.mxu0
        %v874 = vmax.f32 %v870, 0.0
        %v875 = vmax.f32 %v872, 0.0
        %v876 = vld [vmem:[%s5] sm:$0xf]
        %v877 = vld [vmem:[%s6] sm:$0xf]
        %v880 = vcombine.low %v874, %v875
        %882 = vst [vmem:[#allocation2 + $0x4] sm:$0xff] %v880
        %v883 = vld [vmem:[#allocation2] sm:$0xff]
        %v884 = vld [vmem:[#allocation2 + $0x8] sm:$0xf]
        %v885 = vmul.f32 %v883, %v571
        %v886 = vmul.f32 %v884, %v569
        %v889 = vcombine.high %v885, %v885
        %890 = vrot.lane.b32.xlu0 %v885, 17
        %v891 = vpop.permute.xlu0 %890
        %892 = vrot.lane.b32.xlu0 %v889, 17
        %v893 = vpop.permute.xlu0 %892
        %894 = vrot.lane.b32.xlu0 %v886, 17
        %v895 = vpop.permute.xlu0 %894
        %v896 = vsel %vm585, %v891, %v893
        %v897 = vsel %vm585, %v893, %v895
        %900 = vst [vmem:[#allocation3] sm:$0xf] %v896
        %901 = vst [vmem:[#allocation3 + $0x8] sm:$0xf] %v897
        %v902 = vld [vmem:[#allocation2] sm:$0xff]
        %v903 = vld [vmem:[#allocation2 + $0x8] sm:$0xf]
        %v906 = vcombine.low %v902, %v902
        %v907 = vcombine.low %v903, %v903
        %908 = vrot.lane.b32.xlu0 %v906, 16
        %v909 = vpop.permute.xlu0 %908
        %910 = vrot.lane.b32.xlu0 %v902, 16
        %v911 = vpop.permute.xlu0 %910
        %912 = vrot.lane.b32.xlu0 %v907, 16
        %v913 = vpop.permute.xlu0 %912
        %v914 = vsel %vm604, %v909, %v911
        %v915 = vsel %vm604, %v911, %v913
        %918 = vst [vmem:[#allocation3] sm:$0xf0] %v914
        %919 = vst [vmem:[#allocation3 + $0x8] sm:$0xf0] %v915
        %v920 = vld [vmem:[#allocation2] sm:$0xff]
        %v921 = vld [vmem:[#allocation2 + $0x8] sm:$0xf]
        %v922 = vmul.f32 %v920, %v627
        %v923 = vmul.f32 %v921, %v625
        %v926 = vcombine.high %v922, %v922
        %927 = vrot.lane.b32.xlu0 %v922, 15
        %v928 = vpop.permute.xlu0 %927
        %929 = vrot.lane.b32.xlu0 %v926, 15
        %v930 = vpop.permute.xlu0 %929
        %931 = vrot.lane.b32.xlu0 %v923, 15
        %v932 = vpop.permute.xlu0 %931
        %v933 = vsel %vm641, %v928, %v930
        %v934 = vsel %vm641, %v930, %v932
        %937 = vst [vmem:[#allocation3 + $0x10] sm:$0xf] %v933
        %938 = vst [vmem:[#allocation3 + $0x18] sm:$0xf] %v934
        %v939 = vld [vmem:[#allocation2] sm:$0xff]
        %v940 = vld [vmem:[#allocation2 + $0x8] sm:$0xf]
        %v941 = vmul.f32 %v939, %v654
        %v942 = vmul.f32 %v940, %v652
        %v945 = vcombine.low %v941, %v941
        %v946 = vcombine.low %v942, %v942
        %947 = vrot.lane.b32.xlu0 %v945, 1
        %v948 = vpop.permute.xlu0 %947
        %949 = vrot.lane.b32.xlu0 %v941, 1
        %v950 = vpop.permute.xlu0 %949
        %951 = vrot.lane.b32.xlu0 %v946, 1
        %v952 = vpop.permute.xlu0 %951
        %v953 = vsel %vm669, %v948, %v950
        %v954 = vsel %vm669, %v950, %v952
        %957 = vst [vmem:[#allocation3 + $0x10] sm:$0xf0] %v953
        %958 = vst [vmem:[#allocation3 + $0x18] sm:$0xf0] %v954
        %v959 = vld [vmem:[#allocation2 + $0x4] sm:$0xff]
        %v961 = vcombine.high %v959, %v959
        %963 = vst [vmem:[#allocation3 + $0x20] sm:$0xf] %v959
        %964 = vst [vmem:[#allocation3 + $0x28] sm:$0xf] %v961
        %v965 = vld [vmem:[#allocation2 + $0x4] sm:$0xff]
        %v966 = vld [vmem:[#allocation2 + $0xc] sm:$0xf]
        %v967 = vmul.f32 %v965, %v687
        %v968 = vmul.f32 %v966, %v686
        %v971 = vcombine.low %v967, %v967
        %v972 = vcombine.low %v968, %v968
        %973 = vrot.lane.b32.xlu0 %v971, 127
        %v974 = vpop.permute.xlu0 %973
        %975 = vrot.lane.b32.xlu0 %v967, 127
        %v976 = vpop.permute.xlu0 %975
        %977 = vrot.lane.b32.xlu0 %v972, 127
        %v978 = vpop.permute.xlu0 %977
        %v979 = vsel %vm653, %v974, %v976
        %v980 = vsel %vm653, %v976, %v978
        %983 = vst [vmem:[#allocation3 + $0x20] sm:$0xf0] %v979
        %984 = vst [vmem:[#allocation3 + $0x28] sm:$0xf0] %v980
        %v985 = vld [vmem:[#allocation2 + $0x4] sm:$0xff]
        %v986 = vld [vmem:[#allocation2 + $0xc] sm:$0xf]
        %v987 = vmul.f32 %v985, %v713
        %v988 = vmul.f32 %v986, %v712
        %v991 = vcombine.high %v987, %v987
        %992 = vrot.lane.b32.xlu0 %v987, 113
        %v993 = vpop.permute.xlu0 %992
        %994 = vrot.lane.b32.xlu0 %v991, 113
        %v995 = vpop.permute.xlu0 %994
        %996 = vrot.lane.b32.xlu0 %v988, 113
        %v997 = vpop.permute.xlu0 %996
        %v998 = vsel %vm626, %v993, %v995
        %v999 = vsel %vm626, %v995, %v997
        %1002 = vst [vmem:[#allocation3 + $0x30] sm:$0xf] %v998
        %1003 = vst [vmem:[#allocation3 + $0x38] sm:$0xf] %v999
        %v1004 = vld [vmem:[#allocation2 + $0x4] sm:$0xff]
        %v1005 = vld [vmem:[#allocation2 + $0xc] sm:$0xf]
        %v1008 = vcombine.low %v1004, %v1004
        %v1009 = vcombine.low %v1005, %v1005
        %1010 = vrot.lane.b32.xlu0 %v1008, 112
        %v1011 = vpop.permute.xlu0 %1010
        %1012 = vrot.lane.b32.xlu0 %v1004, 112
        %v1013 = vpop.permute.xlu0 %1012
        %1014 = vrot.lane.b32.xlu0 %v1009, 112
        %v1015 = vpop.permute.xlu0 %1014
        %v1016 = vsel %vm745, %v1011, %v1013
        %v1017 = vsel %vm745, %v1013, %v1015
        %1020 = vst [vmem:[#allocation3 + $0x30] sm:$0xf0] %v1016
        %1021 = vst [vmem:[#allocation3 + $0x38] sm:$0xf0] %v1017
        %v1022 = vld [vmem:[#allocation2 + $0x4] sm:$0xff]
        %v1023 = vld [vmem:[#allocation2 + $0xc] sm:$0xf]
        %v1024 = vmul.f32 %v1022, %v757
        %v1025 = vmul.f32 %v1023, %v756
        %v1028 = vcombine.high %v1024, %v1024
        %1029 = vrot.lane.b32.xlu0 %v1024, 111
        %v1030 = vpop.permute.xlu0 %1029
        %1031 = vrot.lane.b32.xlu0 %v1028, 111
        %v1032 = vpop.permute.xlu0 %1031
        %1033 = vrot.lane.b32.xlu0 %v1025, 111
        %v1034 = vpop.permute.xlu0 %1033
        %v1035 = vsel %vm570, %v1030, %v1032
        %v1036 = vsel %vm570, %v1032, %v1034
        %1039 = vst [vmem:[#allocation3 + $0x40] sm:$0xf] %v1035
        %1040 = vst [vmem:[#allocation3 + $0x48] sm:$0xf] %v1036
        %v1041 = vld [vmem:[#allocation3] sm:$0xff]
        %v1042 = vld [vmem:[#allocation3 + $0x8] sm:$0xff]
        %v1043 = vld [vmem:[#allocation3 + $0x10] sm:$0xff]
        %v1044 = vld [vmem:[#allocation3 + $0x18] sm:$0xff]
        %v1045 = vld [vmem:[#allocation3 + $0x20] sm:$0xff]
        %v1046 = vld [vmem:[#allocation3 + $0x28] sm:$0xff]
        %v1047 = vld [vmem:[#allocation3 + $0x30] sm:$0xff]
        %v1048 = vld [vmem:[#allocation3 + $0x38] sm:$0xff]
        %v1049 = vld [vmem:[#allocation3 + $0x40] sm:$0xf]
        %v1050 = vld [vmem:[#allocation3 + $0x48] sm:$0xf]
        %1052 = vset.pattern.permute.xlu0 0
        %1053 = vperm.xlu0 %1052, %v877
        %v1054 = vpop.permute.xlu0 %1053
        %v1057 = vsel %vm792, %v876, 0
        %v1060 = vsel %vm796, %v1049, 0
        %v1063 = vsel %vm796, %v1050, 0
        %1065 = vmatprep.subr.mxu0 %v1042
        %1066 = vmatpush1.msra.mxu0 %v1041
        %1067 = vmatprep.subr.mxu0 %v1044
        %1068 = vmatpush1.msra.mxu0 %v1043
        %1069 = vmatprep.subr.mxu0 %v1046
        %1070 = vmatpush1.msra.mxu0 %v1045
        %1071 = vmatprep.subr.mxu0 %v1048
        %1072 = vmatpush1.msra.mxu0 %v1047
        %1073 = vmatprep.subr.mxu0 %v1063
        %1074 = vmatpush1.msra.mxu0 %v1060
        %1075 = vmatprep.subr.mxu0 0.0
        %1076 = vmatpush1.msra.mxu0 0.0
        %1077 = vmatprep.subr.mxu0 0.0
        %1078 = vmatpush1.msra.mxu0 0.0
        %1079 = vmatprep.subr.mxu0 0.0
        %1080 = vmatpush1.msra.mxu0 0.0
        %1081 = vmatprep.subr.mxu0 0.0
        %1082 = vmatpush1.msra.mxu0 0.0
        %1083 = vmatprep.subr.mxu0 0.0
        %1084 = vmatpush1.msra.mxu0 0.0
        %1085 = vmatprep.subr.mxu0 0.0
        %1086 = vmatpush1.msra.mxu0 0.0
        %1087 = vmatprep.subr.mxu0 0.0
        %1088 = vmatpush1.msra.mxu0 0.0
        %1089 = vmatprep.subr.mxu0 0.0
        %1090 = vmatpush1.msra.mxu0 0.0
        %1091 = vmatprep.subr.mxu0 0.0
        %1092 = vmatpush1.msra.mxu0 0.0
        %1093 = vmatprep.subr.mxu0 0.0
        %1094 = vmatpush1.msra.mxu0 0.0
        %1095 = vmatprep.subr.mxu0 0.0
        %1096 = vmatpush1.msra.mxu0 0.0
        %1097 = vmatprep.subr.mxu0 0.0
        %1098 = vmatpush1.msra.mxu0 0.0
        %1099 = vmatprep.subr.mxu0 0.0
        %1100 = vmatpush1.msra.mxu0 0.0
        %1101 = vmatprep.subr.mxu0 0.0
        %1102 = vmatpush1.msra.mxu0 0.0
        %1103 = vmatprep.subr.mxu0 0.0
        %1104 = vmatpush1.msra.mxu0 0.0
        %1105 = vmatprep.subr.mxu0 0.0
        %1106 = vmatpush1.msra.mxu0 0.0
        %1107 = vmatprep.subr.mxu0 0.0
        %1108 = vmatpush1.msra.mxu0 0.0
        %1109 = vmatprep.subr.mxu0 0.0
        %1110 = vmatpush1.msra.mxu0 0.0
        %1111 = vmatprep.subr.mxu0 0.0
        %1112 = vmatpush1.msra.mxu0 0.0
        %1113 = vmatprep.subr.mxu0 0.0
        %1114 = vmatpush1.msra.mxu0 0.0
        %1115 = vmatprep.subr.mxu0 0.0
        %1116 = vmatpush1.msra.mxu0 0.0
        %1117 = vmatprep.subr.mxu0 0.0
        %1118 = vmatpush1.msra.mxu0 0.0
        %1119 = vmatprep.subr.mxu0 0.0
        %1120 = vmatpush1.msra.mxu0 0.0
        %1121 = vmatprep.subr.mxu0 0.0
        %1122 = vmatpush1.msra.mxu0 0.0
        %1123 = vmatprep.subr.mxu0 0.0
        %1124 = vmatpush1.msra.mxu0 0.0
        %1125 = vmatprep.subr.mxu0 0.0
        %1126 = vmatpush1.msra.mxu0 0.0
        %1127 = vmatprep.subr.mxu0 0.0
        %1128 = vmatpush1.msra.mxu0 0.0
        %1129 = vmatprep.mubr.f32.mxu0 0.0
        %1130 = vmatmul.mubr.f32.gmra.mrb[0].mxu0 %v1057
        %v1131 = vpop.f32.mrb[0].mxu0
        %v1132 = vadd.f32 %v1054, %v1131
        %v1133 = vpop.f32.mrb[0].mxu0
        %v1134 = vadd.f32 %v1054, %v1133
        %1135 = vdwg.mxu0
        %v1136 = vsel %vm796, %v1132, 0.0
        %v1137 = vsel %vm796, %v1134, 0.0
        %v1138 = vadd.f32 %v1136, %v1137
        %1139 = vadd.xlane.f32.xlu0 %v1138
        %v1140 = vpop.xlane.xlu0 %1139
        %v1141 = vrcp.pop 256.0
        %v1142 = vmul.f32 %v1140, %v1141
        %v1143 = vld [vmem:[%s7] sm:$0x3]
        %v1144 = vld [vmem:[%s8] sm:$0x3]
        %vm1145 = vcmask 31744
        %v1147 = vsel %vm1145, %v1143, 0
        %v1150 = vsel %vm796, %v1142, 0
        %1152 = vmatprep.subr.mxu0 0.0
        %1153 = vmatpush1.msra.mxu0 %v1150
        %1154 = vmatprep.subr.mxu0 0.0
        %1155 = vmatpush1.msra.mxu0 0.0
        %1156 = vmatprep.subr.mxu0 0.0
        %1157 = vmatpush1.msra.mxu0 0.0
        %1158 = vmatprep.subr.mxu0 0.0
        %1159 = vmatpush1.msra.mxu0 0.0
        %1160 = vmatprep.subr.mxu0 0.0
        %1161 = vmatpush1.msra.mxu0 0.0
        %1162 = vmatprep.subr.mxu0 0.0
        %1163 = vmatpush1.msra.mxu0 0.0
        %1164 = vmatprep.subr.mxu0 0.0
        %1165 = vmatpush1.msra.mxu0 0.0
        %1166 = vmatprep.subr.mxu0 0.0
        %1167 = vmatpush1.msra.mxu0 0.0
        %1168 = vmatprep.subr.mxu0 0.0
        %1169 = vmatpush1.msra.mxu0 0.0
        %1170 = vmatprep.subr.mxu0 0.0
        %1171 = vmatpush1.msra.mxu0 0.0
        %1172 = vmatprep.subr.mxu0 0.0
        %1173 = vmatpush1.msra.mxu0 0.0
        %1174 = vmatprep.subr.mxu0 0.0
        %1175 = vmatpush1.msra.mxu0 0.0
        %1176 = vmatprep.subr.mxu0 0.0
        %1177 = vmatpush1.msra.mxu0 0.0
        %1178 = vmatprep.subr.mxu0 0.0
        %1179 = vmatpush1.msra.mxu0 0.0
        %1180 = vmatprep.subr.mxu0 0.0
        %1181 = vmatpush1.msra.mxu0 0.0
        %1182 = vmatprep.subr.mxu0 0.0
        %1183 = vmatpush1.msra.mxu0 0.0
        %1184 = vmatprep.subr.mxu0 0.0
        %1185 = vmatpush1.msra.mxu0 0.0
        %1186 = vmatprep.subr.mxu0 0.0
        %1187 = vmatpush1.msra.mxu0 0.0
        %1188 = vmatprep.subr.mxu0 0.0
        %1189 = vmatpush1.msra.mxu0 0.0
        %1190 = vmatprep.subr.mxu0 0.0
        %1191 = vmatpush1.msra.mxu0 0.0
        %1192 = vmatprep.subr.mxu0 0.0
        %1193 = vmatpush1.msra.mxu0 0.0
        %1194 = vmatprep.subr.mxu0 0.0
        %1195 = vmatpush1.msra.mxu0 0.0
        %1196 = vmatprep.subr.mxu0 0.0
        %1197 = vmatpush1.msra.mxu0 0.0
        %1198 = vmatprep.subr.mxu0 0.0
        %1199 = vmatpush1.msra.mxu0 0.0
        %1200 = vmatprep.subr.mxu0 0.0
        %1201 = vmatpush1.msra.mxu0 0.0
        %1202 = vmatprep.subr.mxu0 0.0
        %1203 = vmatpush1.msra.mxu0 0.0
        %1204 = vmatprep.subr.mxu0 0.0
        %1205 = vmatpush1.msra.mxu0 0.0
        %1206 = vmatprep.subr.mxu0 0.0
        %1207 = vmatpush1.msra.mxu0 0.0
        %1208 = vmatprep.subr.mxu0 0.0
        %1209 = vmatpush1.msra.mxu0 0.0
        %1210 = vmatprep.subr.mxu0 0.0
        %1211 = vmatpush1.msra.mxu0 0.0
        %1212 = vmatprep.subr.mxu0 0.0
        %1213 = vmatpush1.msra.mxu0 0.0
        %1214 = vmatprep.subr.mxu0 0.0
        %1215 = vmatpush1.msra.mxu0 0.0
        %1216 = vmatprep.mubr.f32.mxu0 0.0
        %1217 = vmatmul.mubr.f32.gmra.mrb[0].mxu0 %v1147
        %v1218 = vpop.f32.mrb[0].mxu0
        %v1219 = vadd.f32 %v1144, %v1218
        %v1220 = vpop.f32.mrb[0].mxu0
        %1221 = vdwg.mxu0
        %v1222 = vmax.f32 %v1219, 0.0
        %v1223 = vld [vmem:[%s9] sm:$0xf]
        %v1224 = vld [vmem:[%s10] sm:$0xf]
        %vm1225 = vcmask 15360
        %v1227 = vsel %vm1225, %v1223, 0
        %vm1229 = vcmask 1041408
        %v1231 = vsel %vm1229, %v1222, 0
        %1233 = vmatprep.subr.mxu0 0.0
        %1234 = vmatpush1.msra.mxu0 %v1231
        %1235 = vmatprep.subr.mxu0 0.0
        %1236 = vmatpush1.msra.mxu0 0.0
        %1237 = vmatprep.subr.mxu0 0.0
        %1238 = vmatpush1.msra.mxu0 0.0
        %1239 = vmatprep.subr.mxu0 0.0
        %1240 = vmatpush1.msra.mxu0 0.0
        %1241 = vmatprep.subr.mxu0 0.0
        %1242 = vmatpush1.msra.mxu0 0.0
        %1243 = vmatprep.subr.mxu0 0.0
        %1244 = vmatpush1.msra.mxu0 0.0
        %1245 = vmatprep.subr.mxu0 0.0
        %1246 = vmatpush1.msra.mxu0 0.0
        %1247 = vmatprep.subr.mxu0 0.0
        %1248 = vmatpush1.msra.mxu0 0.0
        %1249 = vmatprep.subr.mxu0 0.0
        %1250 = vmatpush1.msra.mxu0 0.0
        %1251 = vmatprep.subr.mxu0 0.0
        %1252 = vmatpush1.msra.mxu0 0.0
        %1253 = vmatprep.subr.mxu0 0.0
        %1254 = vmatpush1.msra.mxu0 0.0
        %1255 = vmatprep.subr.mxu0 0.0
        %1256 = vmatpush1.msra.mxu0 0.0
        %1257 = vmatprep.subr.mxu0 0.0
        %1258 = vmatpush1.msra.mxu0 0.0
        %1259 = vmatprep.subr.mxu0 0.0
        %1260 = vmatpush1.msra.mxu0 0.0
        %1261 = vmatprep.subr.mxu0 0.0
        %1262 = vmatpush1.msra.mxu0 0.0
        %1263 = vmatprep.subr.mxu0 0.0
        %1264 = vmatpush1.msra.mxu0 0.0
        %1265 = vmatprep.subr.mxu0 0.0
        %1266 = vmatpush1.msra.mxu0 0.0
        %1267 = vmatprep.subr.mxu0 0.0
        %1268 = vmatpush1.msra.mxu0 0.0
        %1269 = vmatprep.subr.mxu0 0.0
        %1270 = vmatpush1.msra.mxu0 0.0
        %1271 = vmatprep.subr.mxu0 0.0
        %1272 = vmatpush1.msra.mxu0 0.0
        %1273 = vmatprep.subr.mxu0 0.0
        %1274 = vmatpush1.msra.mxu0 0.0
        %1275 = vmatprep.subr.mxu0 0.0
        %1276 = vmatpush1.msra.mxu0 0.0
        %1277 = vmatprep.subr.mxu0 0.0
        %1278 = vmatpush1.msra.mxu0 0.0
        %1279 = vmatprep.subr.mxu0 0.0
        %1280 = vmatpush1.msra.mxu0 0.0
        %1281 = vmatprep.subr.mxu0 0.0
        %1282 = vmatpush1.msra.mxu0 0.0
        %1283 = vmatprep.subr.mxu0 0.0
        %1284 = vmatpush1.msra.mxu0 0.0
        %1285 = vmatprep.subr.mxu0 0.0
        %1286 = vmatpush1.msra.mxu0 0.0
        %1287 = vmatprep.subr.mxu0 0.0
        %1288 = vmatpush1.msra.mxu0 0.0
        %1289 = vmatprep.subr.mxu0 0.0
        %1290 = vmatpush1.msra.mxu0 0.0
        %1291 = vmatprep.subr.mxu0 0.0
        %1292 = vmatpush1.msra.mxu0 0.0
        %1293 = vmatprep.subr.mxu0 0.0
        %1294 = vmatpush1.msra.mxu0 0.0
        %1295 = vmatprep.subr.mxu0 0.0
        %1296 = vmatpush1.msra.mxu0 0.0
        %1297 = vmatprep.mubr.f32.mxu0 0.0
        %1298 = vmatmul.mubr.f32.gmra.mrb[0].mxu0 %v1227
        %v1299 = vpop.f32.mrb[0].mxu0
        %v1300 = vadd.f32 %v1224, %v1299
        %v1301 = vpop.f32.mrb[0].mxu0
        %1302 = vdwg.mxu0
        %v1303 = vxor.u32 %v1300, 2147483648
        %v1304 = vmul.f32 %v1303, 1.442695
        %v1305 = vpow.pop %v1304
        %v1306 = vadd.f32 %v1305, 1.0
        %v1307 = vrcp.pop %v1306
        %v1308 = vmul.f32 1.0, %v1307
        %v1309 = vld [vmem:[%s11] sm:$0xff]
        %v1310 = vld [vmem:[%s12] sm:$0xff]
        %1312 = vset.pattern.permute.xlu0 0
        %1313 = vperm.xlu0 %1312, %v1310
        %v1314 = vpop.permute.xlu0 %1313
        %v1317 = vsel %vm1145, %v1309, 0
        %v1320 = vsel %vm796, %v1132, 0
        %v1323 = vsel %vm796, %v1134, 0
        %1325 = vmatprep.subr.mxu0 %v1323
        %1326 = vmatpush1.msra.mxu0 %v1320
        %1327 = vmatprep.subr.mxu0 0.0
        %1328 = vmatpush1.msra.mxu0 0.0
        %1329 = vmatprep.subr.mxu0 0.0
        %1330 = vmatpush1.msra.mxu0 0.0
        %1331 = vmatprep.subr.mxu0 0.0
        %1332 = vmatpush1.msra.mxu0 0.0
        %1333 = vmatprep.subr.mxu0 0.0
        %1334 = vmatpush1.msra.mxu0 0.0
        %1335 = vmatprep.subr.mxu0 0.0
        %1336 = vmatpush1.msra.mxu0 0.0
        %1337 = vmatprep.subr.mxu0 0.0
        %1338 = vmatpush1.msra.mxu0 0.0
        %1339 = vmatprep.subr.mxu0 0.0
        %1340 = vmatpush1.msra.mxu0 0.0
        %1341 = vmatprep.subr.mxu0 0.0
        %1342 = vmatpush1.msra.mxu0 0.0
        %1343 = vmatprep.subr.mxu0 0.0
        %1344 = vmatpush1.msra.mxu0 0.0
        %1345 = vmatprep.subr.mxu0 0.0
        %1346 = vmatpush1.msra.mxu0 0.0
        %1347 = vmatprep.subr.mxu0 0.0
        %1348 = vmatpush1.msra.mxu0 0.0
        %1349 = vmatprep.subr.mxu0 0.0
        %1350 = vmatpush1.msra.mxu0 0.0
        %1351 = vmatprep.subr.mxu0 0.0
        %1352 = vmatpush1.msra.mxu0 0.0
        %1353 = vmatprep.subr.mxu0 0.0
        %1354 = vmatpush1.msra.mxu0 0.0
        %1355 = vmatprep.subr.mxu0 0.0
        %1356 = vmatpush1.msra.mxu0 0.0
        %1357 = vmatprep.subr.mxu0 0.0
        %1358 = vmatpush1.msra.mxu0 0.0
        %1359 = vmatprep.subr.mxu0 0.0
        %1360 = vmatpush1.msra.mxu0 0.0
        %1361 = vmatprep.subr.mxu0 0.0
        %1362 = vmatpush1.msra.mxu0 0.0
        %1363 = vmatprep.subr.mxu0 0.0
        %1364 = vmatpush1.msra.mxu0 0.0
        %1365 = vmatprep.subr.mxu0 0.0
        %1366 = vmatpush1.msra.mxu0 0.0
        %1367 = vmatprep.subr.mxu0 0.0
        %1368 = vmatpush1.msra.mxu0 0.0
        %1369 = vmatprep.subr.mxu0 0.0
        %1370 = vmatpush1.msra.mxu0 0.0
        %1371 = vmatprep.subr.mxu0 0.0
        %1372 = vmatpush1.msra.mxu0 0.0
        %1373 = vmatprep.subr.mxu0 0.0
        %1374 = vmatpush1.msra.mxu0 0.0
        %1375 = vmatprep.subr.mxu0 0.0
        %1376 = vmatpush1.msra.mxu0 0.0
        %1377 = vmatprep.subr.mxu0 0.0
        %1378 = vmatpush1.msra.mxu0 0.0
        %1379 = vmatprep.subr.mxu0 0.0
        %1380 = vmatpush1.msra.mxu0 0.0
        %1381 = vmatprep.subr.mxu0 0.0
        %1382 = vmatpush1.msra.mxu0 0.0
        %1383 = vmatprep.subr.mxu0 0.0
        %1384 = vmatpush1.msra.mxu0 0.0
        %1385 = vmatprep.subr.mxu0 0.0
        %1386 = vmatpush1.msra.mxu0 0.0
        %1387 = vmatprep.subr.mxu0 0.0
        %1388 = vmatpush1.msra.mxu0 0.0
        %1389 = vmatprep.mubr.f32.mxu0 0.0
        %1390 = vmatmul.mubr.f32.gmra.mrb[0].mxu0 %v1317
        %v1391 = vpop.f32.mrb[0].mxu0
        %v1392 = vadd.f32 %v1314, %v1391
        %v1393 = vpop.f32.mrb[0].mxu0
        %v1394 = vadd.f32 %v1314, %v1393
        %1395 = vdwg.mxu0
        %v1396 = vmax.f32 %v1392, 0.0
        %v1397 = vmax.f32 %v1394, 0.0
        %v1398 = vld [vmem:[%s13] sm:$0xf]
        %v1399 = vld [vmem:[%s14] sm:$0xf]
        %1401 = vset.pattern.permute.xlu0 0
        %1402 = vperm.xlu0 %1401, %v1399
        %v1403 = vpop.permute.xlu0 %1402
        %vm1405 = vcmask 64512
        %v1407 = vsel %vm1405, %v1398, 0
        %1409 = vmatprep.subr.mxu0 %v1397
        %1410 = vmatpush1.msra.mxu0 %v1396
        %1411 = vmatprep.subr.mxu0 0.0
        %1412 = vmatpush1.msra.mxu0 0.0
        %1413 = vmatprep.subr.mxu0 0.0
        %1414 = vmatpush1.msra.mxu0 0.0
        %1415 = vmatprep.subr.mxu0 0.0
        %1416 = vmatpush1.msra.mxu0 0.0
        %1417 = vmatprep.subr.mxu0 0.0
        %1418 = vmatpush1.msra.mxu0 0.0
        %1419 = vmatprep.subr.mxu0 0.0
        %1420 = vmatpush1.msra.mxu0 0.0
        %1421 = vmatprep.subr.mxu0 0.0
        %1422 = vmatpush1.msra.mxu0 0.0
        %1423 = vmatprep.subr.mxu0 0.0
        %1424 = vmatpush1.msra.mxu0 0.0
        %1425 = vmatprep.subr.mxu0 0.0
        %1426 = vmatpush1.msra.mxu0 0.0
        %1427 = vmatprep.subr.mxu0 0.0
        %1428 = vmatpush1.msra.mxu0 0.0
        %1429 = vmatprep.subr.mxu0 0.0
        %1430 = vmatpush1.msra.mxu0 0.0
        %1431 = vmatprep.subr.mxu0 0.0
        %1432 = vmatpush1.msra.mxu0 0.0
        %1433 = vmatprep.subr.mxu0 0.0
        %1434 = vmatpush1.msra.mxu0 0.0
        %1435 = vmatprep.subr.mxu0 0.0
        %1436 = vmatpush1.msra.mxu0 0.0
        %1437 = vmatprep.subr.mxu0 0.0
        %1438 = vmatpush1.msra.mxu0 0.0
        %1439 = vmatprep.subr.mxu0 0.0
        %1440 = vmatpush1.msra.mxu0 0.0
        %1441 = vmatprep.subr.mxu0 0.0
        %1442 = vmatpush1.msra.mxu0 0.0
        %1443 = vmatprep.subr.mxu0 0.0
        %1444 = vmatpush1.msra.mxu0 0.0
        %1445 = vmatprep.subr.mxu0 0.0
        %1446 = vmatpush1.msra.mxu0 0.0
        %1447 = vmatprep.subr.mxu0 0.0
        %1448 = vmatpush1.msra.mxu0 0.0
        %1449 = vmatprep.subr.mxu0 0.0
        %1450 = vmatpush1.msra.mxu0 0.0
        %1451 = vmatprep.subr.mxu0 0.0
        %1452 = vmatpush1.msra.mxu0 0.0
        %1453 = vmatprep.subr.mxu0 0.0
        %1454 = vmatpush1.msra.mxu0 0.0
        %1455 = vmatprep.subr.mxu0 0.0
        %1456 = vmatpush1.msra.mxu0 0.0
        %1457 = vmatprep.subr.mxu0 0.0
        %1458 = vmatpush1.msra.mxu0 0.0
        %1459 = vmatprep.subr.mxu0 0.0
        %1460 = vmatpush1.msra.mxu0 0.0
        %1461 = vmatprep.subr.mxu0 0.0
        %1462 = vmatpush1.msra.mxu0 0.0
        %1463 = vmatprep.subr.mxu0 0.0
        %1464 = vmatpush1.msra.mxu0 0.0
        %1465 = vmatprep.subr.mxu0 0.0
        %1466 = vmatpush1.msra.mxu0 0.0
        %1467 = vmatprep.subr.mxu0 0.0
        %1468 = vmatpush1.msra.mxu0 0.0
        %1469 = vmatprep.subr.mxu0 0.0
        %1470 = vmatpush1.msra.mxu0 0.0
        %1471 = vmatprep.subr.mxu0 0.0
        %1472 = vmatpush1.msra.mxu0 0.0
        %1473 = vmatprep.mubr.f32.mxu0 0.0
        %1474 = vmatmul.mubr.f32.gmra.mrb[0].mxu0 %v1407
        %v1475 = vpop.f32.mrb[0].mxu0
        %v1476 = vadd.f32 %v1403, %v1475
        %v1477 = vpop.f32.mrb[0].mxu0
        %v1478 = vadd.f32 %v1403, %v1477
        %1479 = vdwg.mxu0
        %v1480 = vxor.u32 %v1476, 2147483648
        %v1481 = vxor.u32 %v1478, 2147483648
        %v1482 = vmul.f32 %v1480, 1.442695
        %v1483 = vpow.pop %v1482
        %v1484 = vmul.f32 %v1481, 1.442695
        %v1485 = vpow.pop %v1484
        %v1486 = vadd.f32 %v1483, 1.0
        %v1487 = vadd.f32 %v1485, 1.0
        %v1488 = vrcp.pop %v1486
        %v1489 = vmul.f32 1.0, %v1488
        %v1490 = vrcp.pop %v1487
        %v1491 = vmul.f32 1.0, %v1490
        %1493 = vset.pattern.permute.xlu0 0
        %1494 = vperm.xlu0 %1493, %v1308
        %v1495 = vpop.permute.xlu0 %1494
        %v1497 = vmul.f32 %v1132, %v1495
        %v1498 = vmul.f32 %v1134, %v1495
        %1499 = vst [vmem:[#allocation4] sm:$0xf] %v1497
        %1500 = vst [vmem:[#allocation4 + $0x8] sm:$0xf] %v1498
        %v1501 = vmul.f32 %v1132, %v1489
        %v1502 = vmul.f32 %v1134, %v1491
        %v1505 = vrot.slane %v1501, 4
        %v1506 = vrot.slane %v1502, 4
        %1509 = vst [vmem:[#allocation4] sm:$0xf0] %v1505
        %1510 = vst [vmem:[#allocation4 + $0x8] sm:$0xf0] %v1506
        %v1511 = vld [vmem:[%s15] sm:$0xf]
        %v1512 = vld [vmem:[#allocation4] sm:$0xff]
        %v1513 = vld [vmem:[#allocation4 + $0x8] sm:$0xff]
        %v1514 = vld [vmem:[%s16] sm:$0xf]
        %1516 = vset.pattern.permute.xlu0 0
        %1517 = vperm.xlu0 %1516, %v1514
        %v1518 = vpop.permute.xlu0 %1517
        %v1521 = vsel %vm1405, %v1511, 0
        %1523 = vmatprep.subr.mxu0 %v1513
        %1524 = vmatpush1.msra.mxu0 %v1512
        %1525 = vmatprep.subr.mxu0 0.0
        %1526 = vmatpush1.msra.mxu0 0.0
        %1527 = vmatprep.subr.mxu0 0.0
        %1528 = vmatpush1.msra.mxu0 0.0
        %1529 = vmatprep.subr.mxu0 0.0
        %1530 = vmatpush1.msra.mxu0 0.0
        %1531 = vmatprep.subr.mxu0 0.0
        %1532 = vmatpush1.msra.mxu0 0.0
        %1533 = vmatprep.subr.mxu0 0.0
        %1534 = vmatpush1.msra.mxu0 0.0
        %1535 = vmatprep.subr.mxu0 0.0
        %1536 = vmatpush1.msra.mxu0 0.0
        %1537 = vmatprep.subr.mxu0 0.0
        %1538 = vmatpush1.msra.mxu0 0.0
        %1539 = vmatprep.subr.mxu0 0.0
        %1540 = vmatpush1.msra.mxu0 0.0
        %1541 = vmatprep.subr.mxu0 0.0
        %1542 = vmatpush1.msra.mxu0 0.0
        %1543 = vmatprep.subr.mxu0 0.0
        %1544 = vmatpush1.msra.mxu0 0.0
        %1545 = vmatprep.subr.mxu0 0.0
        %1546 = vmatpush1.msra.mxu0 0.0
        %1547 = vmatprep.subr.mxu0 0.0
        %1548 = vmatpush1.msra.mxu0 0.0
        %1549 = vmatprep.subr.mxu0 0.0
        %1550 = vmatpush1.msra.mxu0 0.0
        %1551 = vmatprep.subr.mxu0 0.0
        %1552 = vmatpush1.msra.mxu0 0.0
        %1553 = vmatprep.subr.mxu0 0.0
        %1554 = vmatpush1.msra.mxu0 0.0
        %1555 = vmatprep.subr.mxu0 0.0
        %1556 = vmatpush1.msra.mxu0 0.0
        %1557 = vmatprep.subr.mxu0 0.0
        %1558 = vmatpush1.msra.mxu0 0.0
        %1559 = vmatprep.subr.mxu0 0.0
        %1560 = vmatpush1.msra.mxu0 0.0
        %1561 = vmatprep.subr.mxu0 0.0
        %1562 = vmatpush1.msra.mxu0 0.0
        %1563 = vmatprep.subr.mxu0 0.0
        %1564 = vmatpush1.msra.mxu0 0.0
        %1565 = vmatprep.subr.mxu0 0.0
        %1566 = vmatpush1.msra.mxu0 0.0
        %1567 = vmatprep.subr.mxu0 0.0
        %1568 = vmatpush1.msra.mxu0 0.0
        %1569 = vmatprep.subr.mxu0 0.0
        %1570 = vmatpush1.msra.mxu0 0.0
        %1571 = vmatprep.subr.mxu0 0.0
        %1572 = vmatpush1.msra.mxu0 0.0
        %1573 = vmatprep.subr.mxu0 0.0
        %1574 = vmatpush1.msra.mxu0 0.0
        %1575 = vmatprep.subr.mxu0 0.0
        %1576 = vmatpush1.msra.mxu0 0.0
        %1577 = vmatprep.subr.mxu0 0.0
        %1578 = vmatpush1.msra.mxu0 0.0
        %1579 = vmatprep.subr.mxu0 0.0
        %1580 = vmatpush1.msra.mxu0 0.0
        %1581 = vmatprep.subr.mxu0 0.0
        %1582 = vmatpush1.msra.mxu0 0.0
        %1583 = vmatprep.subr.mxu0 0.0
        %1584 = vmatpush1.msra.mxu0 0.0
        %1585 = vmatprep.subr.mxu0 0.0
        %1586 = vmatpush1.msra.mxu0 0.0
        %1587 = vmatprep.mubr.f32.mxu0 0.0
        %1588 = vmatmul.mubr.f32.gmra.mrb[0].mxu0 %v1521
        %v1589 = vpop.f32.mrb[0].mxu0
        %v1590 = vadd.f32 %v1518, %v1589
        %v1591 = vpop.f32.mrb[0].mxu0
        %v1592 = vadd.f32 %v1518, %v1591
        %1593 = vdwg.mxu0
        %v1596 = vcombine.low %v1590, %v1592
        %v1598 = vadd.f32 %v549, %v1596
        %1599 = vst [vmem:[%s541] sm:$0xff] %v1598
        %s1600 = sand.u32 %s401, 1
        %s1601 = scalar_lea.sflag [#allocation6], %s1600
        %s1602 = sand.u32 %s401, 1
        %s1603 = smul.addr %s1602, 8
        %s1604 = scalar_lea.vmem [#allocation5], %s1603
        // Predicated region
        $region89: #{tpu_custom_call.1} parent=87 // pred_check
          %p1605 = pneg %p411
        $region90: #{tpu_custom_call.1} parent=87 // pred_check_branch
          %1607 = sbr.rel (%p1605) target = $region92
        $region91: #{tpu_custom_call.1} parent=87 // pred_region
          %s1609 = ssub.s32 128, 128
          %1610 = vsyncadd %s1601, %s1609
          %s1611 = smul.addr %s31, 2
          %s1612 = smul.addr %s1611, 64
          %s1613 = scalar_lea.hbm %s17, %s1612
          %s1615 = sshll.u32 %s1604, 4
          %s1616 = int_to_ptr.vmem [resolvable:$true] %s1615
          %1618 = dma.vmem_to_hbm [thread:$0]  %s1616, 128, %s1613, %s1601
        $region92: #{tpu_custom_call.1} parent=87 // pred_fallthru
          _
      $region88: #{tpu_custom_call.1} parent=5 // pred_fallthru
        _
      %p1619 = scmp.le.s32.totalorder 2, %s26
      // Predicated region
      $region93: #{tpu_custom_call.1} parent=5 // pred_check
        %p1620 = pneg %p1619
      $region94: #{tpu_custom_call.1} parent=5 // pred_check_branch
        %1622 = sbr.rel (%p1620) target = $region96
      $region95: #{tpu_custom_call.1} parent=5 // pred_region
        %s1623 = ssub.s32 %s26, 2
        // Predicated region
        $region97: #{tpu_custom_call.1} parent=95 // pred_check
          %p1624 = pneg %p417
        $region98: #{tpu_custom_call.1} parent=95 // pred_check_branch
          %1626 = sbr.rel (%p1624) target = $region100
        $region99: #{tpu_custom_call.1} parent=95 // pred_region
          %s1627 = sand.u32 %s402, 1
          %s1628 = scalar_lea.sflag [#allocation6], %s1627
          %s1629 = sand.u32 %s402, 1
          %s1630 = smul.addr %s1629, 8
          %s1631 = scalar_lea.vmem [#allocation5], %s1630
          %1632 = dma.done %s1628, 128
        $region100: #{tpu_custom_call.1} parent=95 // pred_fallthru
          _
      $region96: #{tpu_custom_call.1} parent=5 // pred_fallthru
        _
    $region6: #{tpu_custom_call.1} parent=1 // loop_footer
      %s30 = sadd.s32 1, %s26
    $region7: #{tpu_custom_call.1} parent=1 // loop_footer_branch
      %25 = sbr.rel target = $region3
    $region8: #{tpu_custom_call.1} parent=1 // loop_exit
      _
    %1633 = vsyncpa [#allocation6], 1
    %s1634 = scalar_lea.sflag [#allocation6], 1
    %1635 = vsyncpa %s1634, 1

</llo_original>
